<compile_context>
chip_gen: v7x
topology: tpu7x:2x2x1
jax: 0.10.0
libtpu: 0.0.40
codegen_flags: <defaults>
</compile_context>

<pallas_src>
import functools

import jax
import jax.numpy as jnp
from jax.experimental import pallas as pl
from jax.experimental.pallas import tpu as pltpu

EPS = 1e-5


def _bn_fold(y, gamma, beta):
    # y: (C, NHW); gamma/beta: (C, 1). PyTorch training-mode BN (biased var),
    # folded to one per-channel scale/shift -> 2 VPU ops per element.
    mean = jnp.mean(y, axis=1, keepdims=True)
    var = jnp.mean((y - mean) ** 2, axis=1, keepdims=True)
    s = gamma * jax.lax.rsqrt(var + EPS)
    return y * s + (beta - mean * s)


def _bottleneck_kernel(rate, W,
                       x_ref, m_ref, w1_ref, g1_ref, b1_ref,
                       w2_ref, g2_ref, b2_ref, w3_ref, g3_ref, b3_ref,
                       out_ref, pad_ref, col_ref):
    _, NHW = x_ref.shape
    P = w1_ref.shape[0]
    r = rate
    S = r * (W + 1)                     # max |flattened-lane shift| of a tap

    x = x_ref[...]                      # (Cin, NHW) f32 (kept f32 for residual)

    # --- conv1 (1x1) + bn1 + relu : (P,Cin) @ (Cin,NHW) on the MXU ----------
    h1 = jnp.dot(w1_ref[...], x.astype(jnp.bfloat16),
                 preferred_element_type=jnp.float32)
    h1 = jnp.maximum(_bn_fold(h1, g1_ref[...], b1_ref[...]), 0.0)

    # --- conv2 (3x3, dilation=r, padding=r) as im2col + ONE matmul ----------
    # pad_ref = h1 with S zero lanes on each side of the flattened NHW axis.
    # Only the two edge strips are zeroed; the interior is fully overwritten.
    zeros_edge = jnp.zeros((P, S), jnp.float32)
    pad_ref[:, 0:S] = zeros_edge
    pad_ref[:, S + NHW:S + NHW + S] = zeros_edge
    pad_ref[:, S:S + NHW] = h1

    # Tap t = kh*3+kw is a lane-shifted slice of pad_ref, multiplied by a
    # precomputed validity mask (handles zero padding and row/image wrap).
    for kh in range(3):
        for kw in range(3):
            t = kh * 3 + kw
            shift = (kh - 1) * r * W + (kw - 1) * r
            tap = pad_ref[:, S + shift:S + shift + NHW] * m_ref[t:t + 1, :]
            col_ref[t * P:(t + 1) * P, :] = tap

    h2 = jnp.dot(w2_ref[...], col_ref[...].astype(jnp.bfloat16),
                 preferred_element_type=jnp.float32)
    h2 = jnp.maximum(_bn_fold(h2, g2_ref[...], b2_ref[...]), 0.0)

    # --- conv3 (1x1 -> 4*planes) + bn3 --------------------------------------
    h3 = jnp.dot(w3_ref[...], h2.astype(jnp.bfloat16),
                 preferred_element_type=jnp.float32)
    h3 = _bn_fold(h3, g3_ref[...], b3_ref[...])

    # --- residual add (f32) + relu ------------------------------------------
    out_ref[...] = jnp.maximum(h3 + x, 0.0)


def atrous_bottleneck(x_nhwc, params, rate):
    N, H, W, Cin = x_nhwc.shape
    P = params["w1"].shape[1]
    NHW = N * H * W
    S = rate * (W + 1)

    # Channel-major, lane-dense layout: channels on sublanes, N*H*W on lanes.
    x_cm = jnp.transpose(x_nhwc, (3, 0, 1, 2)).reshape(Cin, NHW)

    # Precomputed per-tap validity masks (9, NHW): 1 where the dilated tap
    # reads a real pixel, 0 where it falls into the conv's zero padding.
    hh = jnp.arange(H)[:, None]
    ww = jnp.arange(W)[None, :]
    mask_rows = []
    for kh in range(3):
        for kw in range(3):
            dh, dw = (kh - 1) * rate, (kw - 1) * rate
            m = ((hh + dh >= 0) & (hh + dh < H) &
                 (ww + dw >= 0) & (ww + dw < W))
            mask_rows.append(jnp.tile(m.reshape(-1), N))
    masks = jnp.stack(mask_rows, axis=0).astype(jnp.float32)        # (9, NHW)

    # Weights in channel-major (Cout, Cin*taps) layout, bf16 for the MXU.
    w1_cm = params["w1"].T.astype(jnp.bfloat16)                     # (P, Cin)
    w2_cm = jnp.transpose(params["w2"], (3, 0, 1, 2)).reshape(
        P, 9 * P).astype(jnp.bfloat16)                              # (P, 9P)
    w3_cm = params["w3"].T.astype(jnp.bfloat16)                     # (4P, P)
    g1, b1 = params["g1"].reshape(P, 1), params["b1"].reshape(P, 1)
    g2, b2 = params["g2"].reshape(P, 1), params["b2"].reshape(P, 1)
    g3, b3 = params["g3"].reshape(4 * P, 1), params["b3"].reshape(4 * P, 1)

    kernel = functools.partial(_bottleneck_kernel, rate, W)
    vmem = pl.BlockSpec(memory_space=pltpu.MemorySpace.VMEM)
    out_cm = pl.pallas_call(
        kernel,
        out_shape=jax.ShapeDtypeStruct((Cin, NHW), jnp.float32),
        in_specs=[vmem] * 11,
        out_specs=vmem,
        scratch_shapes=[
            pltpu.VMEM((P, NHW + 2 * S), jnp.float32),   # lane-padded h1
            pltpu.VMEM((9 * P, NHW), jnp.float32),       # im2col block
        ],
    )(x_cm, masks, w1_cm, g1, b1, w2_cm, g2, b2, w3_cm, g3, b3)

    # channel-major -> NHWC (layout shuffle stays outside the kernel).
    return jnp.transpose(out_cm.reshape(Cin, N, H, W), (1, 2, 3, 0))


def _bn_ref(y, gamma, beta):
    # y: (NHW, C); gamma/beta: (1, C). Same folded training-mode BN.
    mean = jnp.mean(y, axis=0, keepdims=True)
    var = jnp.mean((y - mean) ** 2, axis=0, keepdims=True)
    s = gamma * jax.lax.rsqrt(var + EPS)
    return y * s + (beta - mean * s)


def atrous_bottleneck_ref(x_nhwc, params, rate):
    """Pure-JAX NHWC reference (PyTorch training-mode forward). Matmul
    operands are cast to bf16 to mirror the kernel's MXU precision."""
    N, H, W, Cin = x_nhwc.shape
    P = params["w1"].shape[1]
    bf = jnp.bfloat16

    xm = x_nhwc.reshape(-1, Cin)
    h1 = jnp.dot(xm.astype(bf), params["w1"].astype(bf),
                 preferred_element_type=jnp.float32)
    h1 = jnp.maximum(_bn_ref(h1, params["g1"], params["b1"]), 0.0)

    pad = jnp.pad(h1.reshape(N, H, W, P),
                  ((0, 0), (rate, rate), (rate, rate), (0, 0)))
    acc = jnp.zeros((N * H * W, P), jnp.float32)
    for kh in range(3):
        for kw in range(3):
            win = pad[:, kh * rate:kh * rate + H, kw * rate:kw * rate + W, :]
            acc = acc + jnp.dot(win.reshape(-1, P).astype(bf),
                                params["w2"][kh, kw].astype(bf),
                                preferred_element_type=jnp.float32)
    h2 = jnp.maximum(_bn_ref(acc, params["g2"], params["b2"]), 0.0)

    h3 = _bn_ref(jnp.dot(h2.astype(bf), params["w3"].astype(bf),
                         preferred_element_type=jnp.float32),
                 params["g3"], params["b3"])
    return jnp.maximum(h3 + xm, 0.0).reshape(N, H, W, Cin)


if __name__ == "__main__":
    # Module config: inplanes = planes * expansion so the residual add is
    # valid without a downsample module; stride=1, dilation rate=2.
    inplanes, planes, rate = 16, 4, 2
    N, H, W = 2, 16, 16

    ks = jax.random.split(jax.random.PRNGKey(0), 10)

    # PyTorch conv weights are (Cout, Cin, KH, KW); built directly in
    # matmul-friendly layouts (Cin, Cout) / (KH, KW, Cin, Cout).
    params = {
        "w1": 0.1 * jax.random.normal(ks[0], (inplanes, planes), jnp.float32),
        "w2": 0.1 * jax.random.normal(ks[1], (3, 3, planes, planes), jnp.float32),
        "w3": 0.1 * jax.random.normal(ks[2], (planes, planes * 4), jnp.float32),
        "g1": 1.0 + 0.1 * jax.random.normal(ks[3], (1, planes), jnp.float32),
        "b1": 0.1 * jax.random.normal(ks[4], (1, planes), jnp.float32),
        "g2": 1.0 + 0.1 * jax.random.normal(ks[5], (1, planes), jnp.float32),
        "b2": 0.1 * jax.random.normal(ks[6], (1, planes), jnp.float32),
        "g3": jnp.ones((1, planes * 4), jnp.float32),
        "b3": jnp.zeros((1, planes * 4), jnp.float32),
    }

    # Input in PyTorch NCHW convention, transposed to NHWC for the wrapper.
    x_nchw = jax.random.normal(ks[9], (N, inplanes, H, W), jnp.float32)
    x_nhwc = jnp.transpose(x_nchw, (0, 2, 3, 1))

    out = atrous_bottleneck(x_nhwc, params, rate)
    out = jax.block_until_ready(out)

    ref = atrous_bottleneck_ref(x_nhwc, params, rate)
    assert out.shape == (N, H, W, inplanes)
    assert jnp.allclose(out, ref, atol=1e-2, rtol=1e-2), (
        float(jnp.max(jnp.abs(out - ref))))

    print("KERNEL_OK")
</pallas_src>

<mosaic_0001>
module attributes {stable_mosaic.version = 11 : i64} {
  func.func @_bottleneck_kernel(%arg0: memref<16x512xf32, #tpu.memory_space<vmem>>, %arg1: memref<9x512xf32, #tpu.memory_space<vmem>>, %arg2: memref<4x16xbf16, #tpu.memory_space<vmem>>, %arg3: memref<4x1xf32, #tpu.memory_space<vmem>>, %arg4: memref<4x1xf32, #tpu.memory_space<vmem>>, %arg5: memref<4x36xbf16, #tpu.memory_space<vmem>>, %arg6: memref<4x1xf32, #tpu.memory_space<vmem>>, %arg7: memref<4x1xf32, #tpu.memory_space<vmem>>, %arg8: memref<16x4xbf16, #tpu.memory_space<vmem>>, %arg9: memref<16x1xf32, #tpu.memory_space<vmem>>, %arg10: memref<16x1xf32, #tpu.memory_space<vmem>>, %arg11: memref<16x512xf32, #tpu.memory_space<vmem>>, %arg12: memref<4x580xf32, #tpu.memory_space<vmem>>, %arg13: memref<36x512xf32, #tpu.memory_space<vmem>>) attributes {dimension_semantics = [], scalar_prefetch = 0 : i64, scratch_operands = 2 : i64, tpu.core_type = #tpu.core_type<tc>} {
    %c0 = arith.constant 0 : index
    %c0_0 = arith.constant 0 : index
    %0 = vector.load %arg0[%c0, %c0_0] : memref<16x512xf32, #tpu.memory_space<vmem>>, vector<16x512xf32>
    %c0_1 = arith.constant 0 : index
    %c0_2 = arith.constant 0 : index
    %1 = vector.load %arg2[%c0_1, %c0_2] : memref<4x16xbf16, #tpu.memory_space<vmem>>, vector<4x16xbf16>
    %2 = arith.truncf %0 : vector<16x512xf32> to vector<16x512xbf16>
    %cst = arith.constant dense<0.000000e+00> : vector<4x512xf32>
    %3 = tpu.matmul %1, %2, %cst {dimension_numbers = #tpu.dot_dimension_numbers<[1], [0], [0], [1], [0, 0, 1, 1], [], []>} : vector<4x16xbf16>, vector<16x512xbf16>, vector<4x512xf32> -> vector<4x512xf32>
    %c0_3 = arith.constant 0 : index
    %c0_4 = arith.constant 0 : index
    %4 = vector.load %arg3[%c0_3, %c0_4] : memref<4x1xf32, #tpu.memory_space<vmem>>, vector<4x1xf32>
    %c0_5 = arith.constant 0 : index
    %c0_6 = arith.constant 0 : index
    %5 = vector.load %arg4[%c0_5, %c0_6] : memref<4x1xf32, #tpu.memory_space<vmem>>, vector<4x1xf32>
    %cst_7 = arith.constant dense<0.000000e+00> : vector<4xf32>
    %6 = vector.multi_reduction <add>, %3, %cst_7 [1] : vector<4x512xf32> to vector<4xf32>
    %7 = vector.shape_cast %6 : vector<4xf32> to vector<4x1xf32>
    %cst_8 = arith.constant 5.120000e+02 : f32
    %8 = vector.broadcast %cst_8 : f32 to vector<4x1xf32>
    %9 = arith.divf %7, %8 : vector<4x1xf32>
    %10 = vector.broadcast %9 : vector<4x1xf32> to vector<4x512xf32>
    %11 = arith.subf %3, %10 : vector<4x512xf32>
    %12 = arith.mulf %11, %11 : vector<4x512xf32>
    %cst_9 = arith.constant dense<0.000000e+00> : vector<4xf32>
    %13 = vector.multi_reduction <add>, %12, %cst_9 [1] : vector<4x512xf32> to vector<4xf32>
    %14 = vector.shape_cast %13 : vector<4xf32> to vector<4x1xf32>
    %cst_10 = arith.constant 5.120000e+02 : f32
    %15 = vector.broadcast %cst_10 : f32 to vector<4x1xf32>
    %16 = arith.divf %14, %15 : vector<4x1xf32>
    %cst_11 = arith.constant 9.99999974E-6 : f32
    %17 = vector.broadcast %cst_11 : f32 to vector<4x1xf32>
    %18 = arith.addf %16, %17 : vector<4x1xf32>
    %19 = math.rsqrt %18 : vector<4x1xf32>
    %20 = arith.mulf %4, %19 : vector<4x1xf32>
    %21 = vector.broadcast %20 : vector<4x1xf32> to vector<4x512xf32>
    %22 = arith.mulf %3, %21 : vector<4x512xf32>
    %23 = arith.mulf %9, %20 : vector<4x1xf32>
    %24 = arith.subf %5, %23 : vector<4x1xf32>
    %25 = vector.broadcast %24 : vector<4x1xf32> to vector<4x512xf32>
    %26 = arith.addf %22, %25 : vector<4x512xf32>
    %cst_12 = arith.constant 0.000000e+00 : f32
    %27 = vector.broadcast %cst_12 : f32 to vector<4x512xf32>
    %28 = arith.maximumf %26, %27 : vector<4x512xf32>
    %cst_13 = arith.constant 0.000000e+00 : f32
    %29 = vector.broadcast %cst_13 : f32 to vector<4x34xf32>
    %c0_14 = arith.constant 0 : index
    %c0_15 = arith.constant 0 : index
    %30 = vector.load %arg12[%c0_14, %c0_15] : memref<4x580xf32, #tpu.memory_space<vmem>>, vector<4x34xf32>
    tpu.vector_store %arg12[%c0_14, %c0_15], %29 {strides = array<i32>} : memref<4x580xf32, #tpu.memory_space<vmem>>, vector<4x34xf32>,
    %c0_16 = arith.constant 0 : index
    %c546 = arith.constant 546 : index
    %31 = vector.load %arg12[%c0_16, %c546] : memref<4x580xf32, #tpu.memory_space<vmem>>, vector<4x34xf32>
    tpu.vector_store %arg12[%c0_16, %c546], %29 {strides = array<i32>} : memref<4x580xf32, #tpu.memory_space<vmem>>, vector<4x34xf32>,
    %c0_17 = arith.constant 0 : index
    %c34 = arith.constant 34 : index
    %32 = vector.load %arg12[%c0_17, %c34] : memref<4x580xf32, #tpu.memory_space<vmem>>, vector<4x512xf32>
    tpu.vector_store %arg12[%c0_17, %c34], %28 {strides = array<i32>} : memref<4x580xf32, #tpu.memory_space<vmem>>, vector<4x512xf32>,
    %c0_18 = arith.constant 0 : index
    %c0_19 = arith.constant 0 : index
    %33 = vector.load %arg12[%c0_18, %c0_19] : memref<4x580xf32, #tpu.memory_space<vmem>>, vector<4x512xf32>
    %c0_20 = arith.constant 0 : index
    %c0_21 = arith.constant 0 : index
    %34 = vector.load %arg1[%c0_20, %c0_21] : memref<9x512xf32, #tpu.memory_space<vmem>>, vector<1x512xf32>
    %35 = vector.broadcast %34 : vector<1x512xf32> to vector<4x512xf32>
    %36 = arith.mulf %33, %35 : vector<4x512xf32>
    %c0_22 = arith.constant 0 : index
    %c0_23 = arith.constant 0 : index
    %37 = vector.load %arg13[%c0_22, %c0_23] : memref<36x512xf32, #tpu.memory_space<vmem>>, vector<4x512xf32>
    tpu.vector_store %arg13[%c0_22, %c0_23], %36 {strides = array<i32>} : memref<36x512xf32, #tpu.memory_space<vmem>>, vector<4x512xf32>,
    %c0_24 = arith.constant 0 : index
    %c2 = arith.constant 2 : index
    %38 = vector.load %arg12[%c0_24, %c2] : memref<4x580xf32, #tpu.memory_space<vmem>>, vector<4x512xf32>
    %c1 = arith.constant 1 : index
    %c0_25 = arith.constant 0 : index
    %39 = vector.load %arg1[%c1, %c0_25] : memref<9x512xf32, #tpu.memory_space<vmem>>, vector<1x512xf32>
    %40 = vector.broadcast %39 : vector<1x512xf32> to vector<4x512xf32>
    %41 = arith.mulf %38, %40 : vector<4x512xf32>
    %c4 = arith.constant 4 : index
    %c0_26 = arith.constant 0 : index
    %42 = vector.load %arg13[%c4, %c0_26] : memref<36x512xf32, #tpu.memory_space<vmem>>, vector<4x512xf32>
    tpu.vector_store %arg13[%c4, %c0_26], %41 {strides = array<i32>} : memref<36x512xf32, #tpu.memory_space<vmem>>, vector<4x512xf32>,
    %c0_27 = arith.constant 0 : index
    %c4_28 = arith.constant 4 : index
    %43 = vector.load %arg12[%c0_27, %c4_28] : memref<4x580xf32, #tpu.memory_space<vmem>>, vector<4x512xf32>
    %c2_29 = arith.constant 2 : index
    %c0_30 = arith.constant 0 : index
    %44 = vector.load %arg1[%c2_29, %c0_30] : memref<9x512xf32, #tpu.memory_space<vmem>>, vector<1x512xf32>
    %45 = vector.broadcast %44 : vector<1x512xf32> to vector<4x512xf32>
    %46 = arith.mulf %43, %45 : vector<4x512xf32>
    %c8 = arith.constant 8 : index
    %c0_31 = arith.constant 0 : index
    %47 = vector.load %arg13[%c8, %c0_31] : memref<36x512xf32, #tpu.memory_space<vmem>>, vector<4x512xf32>
    tpu.vector_store %arg13[%c8, %c0_31], %46 {strides = array<i32>} : memref<36x512xf32, #tpu.memory_space<vmem>>, vector<4x512xf32>,
    %c0_32 = arith.constant 0 : index
    %c32 = arith.constant 32 : index
    %48 = vector.load %arg12[%c0_32, %c32] : memref<4x580xf32, #tpu.memory_space<vmem>>, vector<4x512xf32>
    %c3 = arith.constant 3 : index
    %c0_33 = arith.constant 0 : index
    %49 = vector.load %arg1[%c3, %c0_33] : memref<9x512xf32, #tpu.memory_space<vmem>>, vector<1x512xf32>
    %50 = vector.broadcast %49 : vector<1x512xf32> to vector<4x512xf32>
    %51 = arith.mulf %48, %50 : vector<4x512xf32>
    %c12 = arith.constant 12 : index
    %c0_34 = arith.constant 0 : index
    %52 = vector.load %arg13[%c12, %c0_34] : memref<36x512xf32, #tpu.memory_space<vmem>>, vector<4x512xf32>
    tpu.vector_store %arg13[%c12, %c0_34], %51 {strides = array<i32>} : memref<36x512xf32, #tpu.memory_space<vmem>>, vector<4x512xf32>,
    %c0_35 = arith.constant 0 : index
    %c34_36 = arith.constant 34 : index
    %53 = vector.load %arg12[%c0_35, %c34_36] : memref<4x580xf32, #tpu.memory_space<vmem>>, vector<4x512xf32>
    %c4_37 = arith.constant 4 : index
    %c0_38 = arith.constant 0 : index
    %54 = vector.load %arg1[%c4_37, %c0_38] : memref<9x512xf32, #tpu.memory_space<vmem>>, vector<1x512xf32>
    %55 = vector.broadcast %54 : vector<1x512xf32> to vector<4x512xf32>
    %56 = arith.mulf %53, %55 : vector<4x512xf32>
    %c16 = arith.constant 16 : index
    %c0_39 = arith.constant 0 : index
    %57 = vector.load %arg13[%c16, %c0_39] : memref<36x512xf32, #tpu.memory_space<vmem>>, vector<4x512xf32>
    tpu.vector_store %arg13[%c16, %c0_39], %56 {strides = array<i32>} : memref<36x512xf32, #tpu.memory_space<vmem>>, vector<4x512xf32>,
    %c0_40 = arith.constant 0 : index
    %c36 = arith.constant 36 : index
    %58 = vector.load %arg12[%c0_40, %c36] : memref<4x580xf32, #tpu.memory_space<vmem>>, vector<4x512xf32>
    %c5 = arith.constant 5 : index
    %c0_41 = arith.constant 0 : index
    %59 = vector.load %arg1[%c5, %c0_41] : memref<9x512xf32, #tpu.memory_space<vmem>>, vector<1x512xf32>
    %60 = vector.broadcast %59 : vector<1x512xf32> to vector<4x512xf32>
    %61 = arith.mulf %58, %60 : vector<4x512xf32>
    %c20 = arith.constant 20 : index
    %c0_42 = arith.constant 0 : index
    %62 = vector.load %arg13[%c20, %c0_42] : memref<36x512xf32, #tpu.memory_space<vmem>>, vector<4x512xf32>
    tpu.vector_store %arg13[%c20, %c0_42], %61 {strides = array<i32>} : memref<36x512xf32, #tpu.memory_space<vmem>>, vector<4x512xf32>,
    %c0_43 = arith.constant 0 : index
    %c64 = arith.constant 64 : index
    %63 = vector.load %arg12[%c0_43, %c64] : memref<4x580xf32, #tpu.memory_space<vmem>>, vector<4x512xf32>
    %c6 = arith.constant 6 : index
    %c0_44 = arith.constant 0 : index
    %64 = vector.load %arg1[%c6, %c0_44] : memref<9x512xf32, #tpu.memory_space<vmem>>, vector<1x512xf32>
    %65 = vector.broadcast %64 : vector<1x512xf32> to vector<4x512xf32>
    %66 = arith.mulf %63, %65 : vector<4x512xf32>
    %c24 = arith.constant 24 : index
    %c0_45 = arith.constant 0 : index
    %67 = vector.load %arg13[%c24, %c0_45] : memref<36x512xf32, #tpu.memory_space<vmem>>, vector<4x512xf32>
    tpu.vector_store %arg13[%c24, %c0_45], %66 {strides = array<i32>} : memref<36x512xf32, #tpu.memory_space<vmem>>, vector<4x512xf32>,
    %c0_46 = arith.constant 0 : index
    %c66 = arith.constant 66 : index
    %68 = vector.load %arg12[%c0_46, %c66] : memref<4x580xf32, #tpu.memory_space<vmem>>, vector<4x512xf32>
    %c7 = arith.constant 7 : index
    %c0_47 = arith.constant 0 : index
    %69 = vector.load %arg1[%c7, %c0_47] : memref<9x512xf32, #tpu.memory_space<vmem>>, vector<1x512xf32>
    %70 = vector.broadcast %69 : vector<1x512xf32> to vector<4x512xf32>
    %71 = arith.mulf %68, %70 : vector<4x512xf32>
    %c28 = arith.constant 28 : index
    %c0_48 = arith.constant 0 : index
    %72 = vector.load %arg13[%c28, %c0_48] : memref<36x512xf32, #tpu.memory_space<vmem>>, vector<4x512xf32>
    tpu.vector_store %arg13[%c28, %c0_48], %71 {strides = array<i32>} : memref<36x512xf32, #tpu.memory_space<vmem>>, vector<4x512xf32>,
    %c0_49 = arith.constant 0 : index
    %c68 = arith.constant 68 : index
    %73 = vector.load %arg12[%c0_49, %c68] : memref<4x580xf32, #tpu.memory_space<vmem>>, vector<4x512xf32>
    %c8_50 = arith.constant 8 : index
    %c0_51 = arith.constant 0 : index
    %74 = vector.load %arg1[%c8_50, %c0_51] : memref<9x512xf32, #tpu.memory_space<vmem>>, vector<1x512xf32>
    %75 = vector.broadcast %74 : vector<1x512xf32> to vector<4x512xf32>
    %76 = arith.mulf %73, %75 : vector<4x512xf32>
    %c32_52 = arith.constant 32 : index
    %c0_53 = arith.constant 0 : index
    %77 = vector.load %arg13[%c32_52, %c0_53] : memref<36x512xf32, #tpu.memory_space<vmem>>, vector<4x512xf32>
    tpu.vector_store %arg13[%c32_52, %c0_53], %76 {strides = array<i32>} : memref<36x512xf32, #tpu.memory_space<vmem>>, vector<4x512xf32>,
    %c0_54 = arith.constant 0 : index
    %c0_55 = arith.constant 0 : index
    %78 = vector.load %arg5[%c0_54, %c0_55] : memref<4x36xbf16, #tpu.memory_space<vmem>>, vector<4x36xbf16>
    %c0_56 = arith.constant 0 : index
    %c0_57 = arith.constant 0 : index
    %79 = vector.load %arg13[%c0_56, %c0_57] : memref<36x512xf32, #tpu.memory_space<vmem>>, vector<36x512xf32>
    %80 = arith.truncf %79 : vector<36x512xf32> to vector<36x512xbf16>
    %cst_58 = arith.constant dense<0.000000e+00> : vector<4x512xf32>
    %81 = tpu.matmul %78, %80, %cst_58 {dimension_numbers = #tpu.dot_dimension_numbers<[1], [0], [0], [1], [0, 0, 1, 1], [], []>} : vector<4x36xbf16>, vector<36x512xbf16>, vector<4x512xf32> -> vector<4x512xf32>
    %c0_59 = arith.constant 0 : index
    %c0_60 = arith.constant 0 : index
    %82 = vector.load %arg6[%c0_59, %c0_60] : memref<4x1xf32, #tpu.memory_space<vmem>>, vector<4x1xf32>
    %c0_61 = arith.constant 0 : index
    %c0_62 = arith.constant 0 : index
    %83 = vector.load %arg7[%c0_61, %c0_62] : memref<4x1xf32, #tpu.memory_space<vmem>>, vector<4x1xf32>
    %cst_63 = arith.constant dense<0.000000e+00> : vector<4xf32>
    %84 = vector.multi_reduction <add>, %81, %cst_63 [1] : vector<4x512xf32> to vector<4xf32>
    %85 = vector.shape_cast %84 : vector<4xf32> to vector<4x1xf32>
    %cst_64 = arith.constant 5.120000e+02 : f32
    %86 = vector.broadcast %cst_64 : f32 to vector<4x1xf32>
    %87 = arith.divf %85, %86 : vector<4x1xf32>
    %88 = vector.broadcast %87 : vector<4x1xf32> to vector<4x512xf32>
    %89 = arith.subf %81, %88 : vector<4x512xf32>
    %90 = arith.mulf %89, %89 : vector<4x512xf32>
    %cst_65 = arith.constant dense<0.000000e+00> : vector<4xf32>
    %91 = vector.multi_reduction <add>, %90, %cst_65 [1] : vector<4x512xf32> to vector<4xf32>
    %92 = vector.shape_cast %91 : vector<4xf32> to vector<4x1xf32>
    %cst_66 = arith.constant 5.120000e+02 : f32
    %93 = vector.broadcast %cst_66 : f32 to vector<4x1xf32>
    %94 = arith.divf %92, %93 : vector<4x1xf32>
    %cst_67 = arith.constant 9.99999974E-6 : f32
    %95 = vector.broadcast %cst_67 : f32 to vector<4x1xf32>
    %96 = arith.addf %94, %95 : vector<4x1xf32>
    %97 = math.rsqrt %96 : vector<4x1xf32>
    %98 = arith.mulf %82, %97 : vector<4x1xf32>
    %99 = vector.broadcast %98 : vector<4x1xf32> to vector<4x512xf32>
    %100 = arith.mulf %81, %99 : vector<4x512xf32>
    %101 = arith.mulf %87, %98 : vector<4x1xf32>
    %102 = arith.subf %83, %101 : vector<4x1xf32>
    %103 = vector.broadcast %102 : vector<4x1xf32> to vector<4x512xf32>
    %104 = arith.addf %100, %103 : vector<4x512xf32>
    %cst_68 = arith.constant 0.000000e+00 : f32
    %105 = vector.broadcast %cst_68 : f32 to vector<4x512xf32>
    %106 = arith.maximumf %104, %105 : vector<4x512xf32>
    %c0_69 = arith.constant 0 : index
    %c0_70 = arith.constant 0 : index
    %107 = vector.load %arg8[%c0_69, %c0_70] : memref<16x4xbf16, #tpu.memory_space<vmem>>, vector<16x4xbf16>
    %108 = arith.truncf %106 : vector<4x512xf32> to vector<4x512xbf16>
    %cst_71 = arith.constant dense<0.000000e+00> : vector<16x512xf32>
    %109 = tpu.matmul %107, %108, %cst_71 {dimension_numbers = #tpu.dot_dimension_numbers<[1], [0], [0], [1], [0, 0, 1, 1], [], []>} : vector<16x4xbf16>, vector<4x512xbf16>, vector<16x512xf32> -> vector<16x512xf32>
    %c0_72 = arith.constant 0 : index
    %c0_73 = arith.constant 0 : index
    %110 = vector.load %arg9[%c0_72, %c0_73] : memref<16x1xf32, #tpu.memory_space<vmem>>, vector<16x1xf32>
    %c0_74 = arith.constant 0 : index
    %c0_75 = arith.constant 0 : index
    %111 = vector.load %arg10[%c0_74, %c0_75] : memref<16x1xf32, #tpu.memory_space<vmem>>, vector<16x1xf32>
    %cst_76 = arith.constant dense<0.000000e+00> : vector<16xf32>
    %112 = vector.multi_reduction <add>, %109, %cst_76 [1] : vector<16x512xf32> to vector<16xf32>
    %113 = vector.shape_cast %112 : vector<16xf32> to vector<16x1xf32>
    %cst_77 = arith.constant 5.120000e+02 : f32
    %114 = vector.broadcast %cst_77 : f32 to vector<16x1xf32>
    %115 = arith.divf %113, %114 : vector<16x1xf32>
    %116 = vector.broadcast %115 : vector<16x1xf32> to vector<16x512xf32>
    %117 = arith.subf %109, %116 : vector<16x512xf32>
    %118 = arith.mulf %117, %117 : vector<16x512xf32>
    %cst_78 = arith.constant dense<0.000000e+00> : vector<16xf32>
    %119 = vector.multi_reduction <add>, %118, %cst_78 [1] : vector<16x512xf32> to vector<16xf32>
    %120 = vector.shape_cast %119 : vector<16xf32> to vector<16x1xf32>
    %cst_79 = arith.constant 5.120000e+02 : f32
    %121 = vector.broadcast %cst_79 : f32 to vector<16x1xf32>
    %122 = arith.divf %120, %121 : vector<16x1xf32>
    %cst_80 = arith.constant 9.99999974E-6 : f32
    %123 = vector.broadcast %cst_80 : f32 to vector<16x1xf32>
    %124 = arith.addf %122, %123 : vector<16x1xf32>
    %125 = math.rsqrt %124 : vector<16x1xf32>
    %126 = arith.mulf %110, %125 : vector<16x1xf32>
    %127 = vector.broadcast %126 : vector<16x1xf32> to vector<16x512xf32>
    %128 = arith.mulf %109, %127 : vector<16x512xf32>
    %129 = arith.mulf %115, %126 : vector<16x1xf32>
    %130 = arith.subf %111, %129 : vector<16x1xf32>
    %131 = vector.broadcast %130 : vector<16x1xf32> to vector<16x512xf32>
    %132 = arith.addf %128, %131 : vector<16x512xf32>
    %133 = arith.addf %132, %0 : vector<16x512xf32>
    %cst_81 = arith.constant 0.000000e+00 : f32
    %134 = vector.broadcast %cst_81 : f32 to vector<16x512xf32>
    %135 = arith.maximumf %133, %134 : vector<16x512xf32>
    %c0_82 = arith.constant 0 : index
    %c0_83 = arith.constant 0 : index
    %136 = vector.load %arg11[%c0_82, %c0_83] : memref<16x512xf32, #tpu.memory_space<vmem>>, vector<16x512xf32>
    tpu.vector_store %arg11[%c0_82, %c0_83], %135 {strides = array<i32>} : memref<16x512xf32, #tpu.memory_space<vmem>>, vector<16x512xf32>,
    return
  }
}

</mosaic_0001>

<llo_original>
// kernel: tpu_custom_call.1
$region0: #{tpu_custom_call.1}
  #allocation0 [shape = 'u32[]', space=smem, size = 0x4, offset = 0x4, fixed_abs, tag = 'smem constant byte address 0x4 - core index']
  #allocation1 [shape = 'u32[144,128]{1,0:T(1,128)}', space=vmem, size = 0x12000, scoped, tag = 'internal scratch']
  #allocation2 [shape = 'f32[4,580]{1,0:T(4,128)}', space=vmem, size = 0x2800, scoped, tag = 'scratch operand']
  #allocation3 [shape = 'f32[36,512]{1,0:T(8,128)}', space=vmem, size = 0x14000, scoped, tag = 'scratch operand']
  %s0 = inlined_call_operand.hbm [shape: f32[16,512], index: 0, kind: input, shape index: {}]
  %s1 = inlined_call_operand.vmem [shape: f32[9,512], index: 1, kind: input, shape index: {}]
  %s2 = inlined_call_operand.vmem [shape: bf16[4,16], index: 2, kind: input, shape index: {}]
  %s3 = inlined_call_operand.vmem [shape: f32[4,1], index: 3, kind: input, shape index: {}]
  %s4 = inlined_call_operand.vmem [shape: f32[4,1], index: 4, kind: input, shape index: {}]
  %s5 = inlined_call_operand.vmem [shape: bf16[4,36], index: 5, kind: input, shape index: {}]
  %s6 = inlined_call_operand.vmem [shape: f32[4,1], index: 6, kind: input, shape index: {}]
  %s7 = inlined_call_operand.vmem [shape: f32[4,1], index: 7, kind: input, shape index: {}]
  %s8 = inlined_call_operand.vmem [shape: bf16[16,4], index: 8, kind: input, shape index: {}]
  %s9 = inlined_call_operand.vmem [shape: f32[16,1], index: 9, kind: input, shape index: {}]
  %s10 = inlined_call_operand.vmem [shape: f32[16,1], index: 10, kind: input, shape index: {}]
  %s11 = inlined_call_operand.hbm [shape: f32[16,512], index: 11, kind: output, shape index: {}]
  %s12 = sld [smem:[#allocation0]]
  $region58: #{tpu_custom_call.1} parent=0
    _
  %s14 = ssub.s32 1, %s12
  %s15 = scalar_select 0, %s14, %s12
  $region1: #{tpu_custom_call.1} parent=0
    #allocation4 [shape = 'u8[32768]{0}', space=vmem, size = 0x8000, scoped, tag = 'input window, operand 0, single buffered']
    #allocation5 [shape = 's32[1]{0}', space=sflag, size = 0x4, scoped, tag = 'scoped memory for tpu_custom_call.1']
    #allocation6 [shape = 's32[1]{0}', space=sflag, size = 0x4, scoped, tag = 'scoped memory for tpu_custom_call.1']
    #allocation7 [shape = 'u8[32768]{0}', space=vmem, size = 0x8000, scoped, tag = 'output window, operand 0, single buffered']
    %16 = vsyncpa [#allocation5], 0
    %17 = vsyncpa [#allocation6], 0
    // Predicated region
    $region2: #{tpu_custom_call.1} parent=1 // pred_check
      _
    $region3: #{tpu_custom_call.1} parent=1 // pred_check_branch
      %19 = sbr.rel (0) target = $region5
    $region4: #{tpu_custom_call.1} parent=1 // pred_region
      %s21 = ssub.s32 1024, 1024
      %22 = vsyncadd [#allocation5], %s21
      %s23 = sshll.u32 [#allocation4], 4
      %s24 = int_to_ptr.vmem [resolvable:$true] %s23
      %29 = dma.hbm_to_vmem [thread:$0]  %s0, 1024, %s24, [#allocation5], 512, 512, 32
    $region5: #{tpu_custom_call.1} parent=1 // pred_fallthru
      _
    // Predicated region
    $region6: #{tpu_custom_call.1} parent=1 // pred_check
      _
    $region7: #{tpu_custom_call.1} parent=1 // pred_check_branch
      %31 = sbr.rel (0) target = $region9
    $region8: #{tpu_custom_call.1} parent=1 // pred_region
      _
    $region9: #{tpu_custom_call.1} parent=1 // pred_fallthru
      _
    // Predicated region
    $region10: #{tpu_custom_call.1} parent=1 // pred_check
      _
    $region11: #{tpu_custom_call.1} parent=1 // pred_check_branch
      %33 = sbr.rel (0) target = $region13
    $region12: #{tpu_custom_call.1} parent=1 // pred_region
      _
    $region13: #{tpu_custom_call.1} parent=1 // pred_fallthru
      _
    // Predicated region
    $region14: #{tpu_custom_call.1} parent=1 // pred_check
      _
    $region15: #{tpu_custom_call.1} parent=1 // pred_check_branch
      %35 = sbr.rel (0) target = $region17
    $region16: #{tpu_custom_call.1} parent=1 // pred_region
      _
    $region17: #{tpu_custom_call.1} parent=1 // pred_fallthru
      _
    // Predicated region
    $region18: #{tpu_custom_call.1} parent=1 // pred_check
      _
    $region19: #{tpu_custom_call.1} parent=1 // pred_check_branch
      %37 = sbr.rel (0) target = $region21
    $region20: #{tpu_custom_call.1} parent=1 // pred_region
      _
    $region21: #{tpu_custom_call.1} parent=1 // pred_fallthru
      _
    // Predicated region
    $region22: #{tpu_custom_call.1} parent=1 // pred_check
      _
    $region23: #{tpu_custom_call.1} parent=1 // pred_check_branch
      %39 = sbr.rel (0) target = $region25
    $region24: #{tpu_custom_call.1} parent=1 // pred_region
      _
    $region25: #{tpu_custom_call.1} parent=1 // pred_fallthru
      _
    // Predicated region
    $region26: #{tpu_custom_call.1} parent=1 // pred_check
      _
    $region27: #{tpu_custom_call.1} parent=1 // pred_check_branch
      %41 = sbr.rel (0) target = $region29
    $region28: #{tpu_custom_call.1} parent=1 // pred_region
      _
    $region29: #{tpu_custom_call.1} parent=1 // pred_fallthru
      _
    // Predicated region
    $region30: #{tpu_custom_call.1} parent=1 // pred_check
      _
    $region31: #{tpu_custom_call.1} parent=1 // pred_check_branch
      %43 = sbr.rel (0) target = $region33
    $region32: #{tpu_custom_call.1} parent=1 // pred_region
      _
    $region33: #{tpu_custom_call.1} parent=1 // pred_fallthru
      _
    // Predicated region
    $region34: #{tpu_custom_call.1} parent=1 // pred_check
      _
    $region35: #{tpu_custom_call.1} parent=1 // pred_check_branch
      %45 = sbr.rel (0) target = $region37
    $region36: #{tpu_custom_call.1} parent=1 // pred_region
      _
    $region37: #{tpu_custom_call.1} parent=1 // pred_fallthru
      _
    // Predicated region
    $region38: #{tpu_custom_call.1} parent=1 // pred_check
      _
    $region39: #{tpu_custom_call.1} parent=1 // pred_check_branch
      %47 = sbr.rel (0) target = $region41
    $region40: #{tpu_custom_call.1} parent=1 // pred_region
      _
    $region41: #{tpu_custom_call.1} parent=1 // pred_fallthru
      _
    // Predicated region
    $region42: #{tpu_custom_call.1} parent=1 // pred_check
      _
    $region43: #{tpu_custom_call.1} parent=1 // pred_check_branch
      %49 = sbr.rel (0) target = $region45
    $region44: #{tpu_custom_call.1} parent=1 // pred_region
      _
    $region45: #{tpu_custom_call.1} parent=1 // pred_fallthru
      _
    // Predicated region
    $region46: #{tpu_custom_call.1} parent=1 // pred_check
      _
    $region47: #{tpu_custom_call.1} parent=1 // pred_check_branch
      %51 = sbr.rel (0) target = $region49
    $region48: #{tpu_custom_call.1} parent=1 // pred_region
      %52 = dma.done [#allocation5], 1024
    $region49: #{tpu_custom_call.1} parent=1 // pred_fallthru
      _
    %v54 = vld [vmem:[#allocation4] sm:$0xff]
    %v55 = vld [vmem:[#allocation4 + $0x8] sm:$0xff]
    %v56 = vld [vmem:[#allocation4 + $0x10] sm:$0xff]
    %v57 = vld [vmem:[#allocation4 + $0x18] sm:$0xff]
    %v58 = vld [vmem:[#allocation4 + $0x20] sm:$0xff]
    %v59 = vld [vmem:[#allocation4 + $0x28] sm:$0xff]
    %v60 = vld [vmem:[#allocation4 + $0x30] sm:$0xff]
    %v61 = vld [vmem:[#allocation4 + $0x38] sm:$0xff]
    %v62 = vld [vmem:[%s2] sm:$0x3]
    %v63 = vpack.c.bf16 %v58, %v54
    %v64 = vpack.c.bf16 %v59, %v55
    %v65 = vpack.c.bf16 %v60, %v56
    %v66 = vpack.c.bf16 %v61, %v57
    %vm67 = vcmask 130048
    %v69 = vsel %vm67, %v62, 0
    %71 = vmatprep.subr.bf16.mxu0 %v64
    %72 = vmatpush1.bf16.msra.mxu0 %v63
    %73 = vmatprep.subr.bf16.mxu0 0
    %74 = vmatpush1.bf16.msra.mxu0 0
    %75 = vmatprep.subr.bf16.mxu0 0
    %76 = vmatpush1.bf16.msra.mxu0 0
    %77 = vmatprep.subr.bf16.mxu0 0
    %78 = vmatpush1.bf16.msra.mxu0 0
    %79 = vmatprep.subr.bf16.mxu0 0
    %80 = vmatpush1.bf16.msra.mxu0 0
    %81 = vmatprep.subr.bf16.mxu0 0
    %82 = vmatpush1.bf16.msra.mxu0 0
    %83 = vmatprep.subr.bf16.mxu0 0
    %84 = vmatpush1.bf16.msra.mxu0 0
    %85 = vmatprep.subr.bf16.mxu0 0
    %86 = vmatpush1.bf16.msra.mxu0 0
    %87 = vmatprep.subr.bf16.mxu0 0
    %88 = vmatpush1.bf16.msra.mxu0 0
    %89 = vmatprep.subr.bf16.mxu0 0
    %90 = vmatpush1.bf16.msra.mxu0 0
    %91 = vmatprep.subr.bf16.mxu0 0
    %92 = vmatpush1.bf16.msra.mxu0 0
    %93 = vmatprep.subr.bf16.mxu0 0
    %94 = vmatpush1.bf16.msra.mxu0 0
    %95 = vmatprep.subr.bf16.mxu0 0
    %96 = vmatpush1.bf16.msra.mxu0 0
    %97 = vmatprep.subr.bf16.mxu0 0
    %98 = vmatpush1.bf16.msra.mxu0 0
    %99 = vmatprep.subr.bf16.mxu0 0
    %100 = vmatpush1.bf16.msra.mxu0 0
    %101 = vmatprep.subr.bf16.mxu0 0
    %102 = vmatpush1.bf16.msra.mxu0 0
    %103 = vmatprep.mubr.bf16.mxu0 0
    %104 = vmatmul.mubr.bf16.gmra.mrb[0].mxu0 %v69
    %v105 = vpop.f32.mrb[0].mxu0
    %v106 = vadd.f32 0.0, %v105
    %v107 = vpop.f32.mrb[0].mxu0
    %v108 = vadd.f32 0.0, %v107
    %v109 = vpop.f32.mrb[0].mxu0
    %v110 = vpop.f32.mrb[0].mxu0
    %111 = vdwg.mxu0
    %112 = vmatprep.subr.bf16.mxu0 %v66
    %113 = vmatpush1.bf16.msra.mxu0 %v65
    %114 = vmatprep.subr.bf16.mxu0 0
    %115 = vmatpush1.bf16.msra.mxu0 0
    %116 = vmatprep.subr.bf16.mxu0 0
    %117 = vmatpush1.bf16.msra.mxu0 0
    %118 = vmatprep.subr.bf16.mxu0 0
    %119 = vmatpush1.bf16.msra.mxu0 0
    %120 = vmatprep.subr.bf16.mxu0 0
    %121 = vmatpush1.bf16.msra.mxu0 0
    %122 = vmatprep.subr.bf16.mxu0 0
    %123 = vmatpush1.bf16.msra.mxu0 0
    %124 = vmatprep.subr.bf16.mxu0 0
    %125 = vmatpush1.bf16.msra.mxu0 0
    %126 = vmatprep.subr.bf16.mxu0 0
    %127 = vmatpush1.bf16.msra.mxu0 0
    %128 = vmatprep.subr.bf16.mxu0 0
    %129 = vmatpush1.bf16.msra.mxu0 0
    %130 = vmatprep.subr.bf16.mxu0 0
    %131 = vmatpush1.bf16.msra.mxu0 0
    %132 = vmatprep.subr.bf16.mxu0 0
    %133 = vmatpush1.bf16.msra.mxu0 0
    %134 = vmatprep.subr.bf16.mxu0 0
    %135 = vmatpush1.bf16.msra.mxu0 0
    %136 = vmatprep.subr.bf16.mxu0 0
    %137 = vmatpush1.bf16.msra.mxu0 0
    %138 = vmatprep.subr.bf16.mxu0 0
    %139 = vmatpush1.bf16.msra.mxu0 0
    %140 = vmatprep.subr.bf16.mxu0 0
    %141 = vmatpush1.bf16.msra.mxu0 0
    %142 = vmatprep.subr.bf16.mxu0 0
    %143 = vmatpush1.bf16.msra.mxu0 0
    %144 = vmatprep.mubr.bf16.mxu0 0
    %145 = vmatmul.mubr.bf16.gmra.mrb[0].mxu0 %v69
    %v146 = vpop.f32.mrb[0].mxu0
    %v147 = vadd.f32 0.0, %v146
    %v148 = vpop.f32.mrb[0].mxu0
    %v149 = vadd.f32 0.0, %v148
    %v150 = vpop.f32.mrb[0].mxu0
    %v151 = vpop.f32.mrb[0].mxu0
    %152 = vdwg.mxu0
    %v153 = vld [vmem:[%s3] sm:$0xf]
    %v154 = vld [vmem:[%s4] sm:$0xf]
    %vm155 = vcmask 1043456
    %v156 = vsel %vm155, %v106, 0.0
    %v157 = vsel %vm155, %v108, 0.0
    %v158 = vadd.f32 %v156, %v157
    %v159 = vsel %vm155, %v147, 0.0
    %v160 = vadd.f32 %v158, %v159
    %v161 = vsel %vm155, %v149, 0.0
    %v162 = vadd.f32 %v160, %v161
    %163 = vadd.xlane.f32.xlu0 %v162
    %v164 = vpop.xlane.xlu0 %163
    %v165 = vrcp.pop 512.0
    %v166 = vmul.f32 %v164, %v165
    %v167 = vsub.f32 %v106, %v166
    %v168 = vsub.f32 %v108, %v166
    %v169 = vsub.f32 %v147, %v166
    %v170 = vsub.f32 %v149, %v166
    %v171 = vmul.f32 %v167, %v167
    %v172 = vmul.f32 %v168, %v168
    %v173 = vmul.f32 %v169, %v169
    %v174 = vmul.f32 %v170, %v170
    %v175 = vsel %vm155, %v171, 0.0
    %v176 = vsel %vm155, %v172, 0.0
    %v177 = vadd.f32 %v175, %v176
    %v178 = vsel %vm155, %v173, 0.0
    %v179 = vadd.f32 %v177, %v178
    %v180 = vsel %vm155, %v174, 0.0
    %v181 = vadd.f32 %v179, %v180
    %182 = vadd.xlane.f32.xlu0 %v181
    %v183 = vpop.xlane.xlu0 %182
    %v184 = vmul.f32 %v183, %v165
    %v185 = vadd.f32 %v184, 1e-05
    %v186 = vrsqrt.pop %v185
    %v187 = vmul.f32 %v153, %v186
    %189 = vset.pattern.permute.xlu0 0
    %190 = vperm.xlu0 %189, %v187
    %v191 = vpop.permute.xlu0 %190
    %v193 = vmul.f32 %v106, %v191
    %v194 = vmul.f32 %v108, %v191
    %v195 = vmul.f32 %v147, %v191
    %v196 = vmul.f32 %v149, %v191
    %v197 = vmul.f32 %v166, %v187
    %v198 = vsub.f32 %v154, %v197
    %200 = vset.pattern.permute.xlu0 0
    %201 = vperm.xlu0 %200, %v198
    %v202 = vpop.permute.xlu0 %201
    %v204 = vadd.f32 %v193, %v202
    %v205 = vadd.f32 %v194, %v202
    %v206 = vadd.f32 %v195, %v202
    %v207 = vadd.f32 %v196, %v202
    %v208 = vmax.f32 %v204, 0.0
    %v209 = vmax.f32 %v205, 0.0
    %v210 = vmax.f32 %v206, 0.0
    %v211 = vmax.f32 %v207, 0.0
    %vm212 = vcmask 273408
    %213 = vst.msk [vmem:[#allocation2] sm:$0xf] %vm212, 0.0
    %vm214 = vcmask 552208
    %215 = vst.msk [vmem:[#allocation2 + $0x10] sm:$0xf] %vm214, 0.0
    %v220 = vcombine.low %v208, %v209
    %v221 = vcombine.low %v210, %v211
    %222 = vrot.lane.b32.xlu0 %v220, 34
    %v223 = vpop.permute.xlu0 %222
    %224 = vrot.lane.b32.xlu0 %v221, 34
    %v225 = vpop.permute.xlu0 %224
    %v226 = vrot.slane %v223, 4
    %v227 = vrot.slane %v225, 4
    %vm228 = vcmask 277504
    %v229 = vsel %vm228, %v226, %v223
    %v230 = vsel %vm155, %v226, %v227
    %v231 = vsel %vm228, %v230, %v225
    %vm235 = vcmask 1043728
    %vm236 = vcmask 1047556
    %vm237 = vmor %vm236, %vm235
    %238 = vst.msk [vmem:[#allocation2] sm:$0xff] %vm237, %v229
    %239 = vst [vmem:[#allocation2 + $0x8] sm:$0xff] %v231
    %240 = vst.msk [vmem:[#allocation2 + $0x10] sm:$0xf] %vm212, %v227
    %v241 = vld [vmem:[#allocation2] sm:$0xff]
    %v242 = vld [vmem:[#allocation2 + $0x8] sm:$0xff]
    %v243 = vld [vmem:[%s1] ss:$8 sm:$0xf]
    %v245 = vlaneseq
    %v246 = vshrl.u32 %v245, 7
    %v247 = vsub.s32 0, %v246
    %v248 = vrot.slane %v243, %v247
    %v249 = vlaneseq
    %v250 = vshrl.u32 %v249, 7
    %v251 = vsub.s32 1, %v250
    %v252 = vrot.slane %v243, %v251
    %v253 = vlaneseq
    %v254 = vshrl.u32 %v253, 7
    %v255 = vsub.s32 2, %v254
    %v256 = vrot.slane %v243, %v255
    %v257 = vlaneseq
    %v258 = vshrl.u32 %v257, 7
    %v259 = vsub.s32 3, %v258
    %v260 = vrot.slane %v243, %v259
    %v261 = vcombine.low %v248, %v252
    %v262 = vcombine.low %v256, %v260
    %v265 = vmul.f32 %v241, %v261
    %v266 = vmul.f32 %v242, %v262
    %v269 = vcombine.high %v265, %v265
    %v270 = vcombine.high %v266, %v266
    %273 = vst [vmem:[#allocation3] sm:$0xf] %v265
    %274 = vst [vmem:[#allocation3 + $0x8] sm:$0xf] %v269
    %275 = vst [vmem:[#allocation3 + $0x10] sm:$0xf] %v266
    %276 = vst [vmem:[#allocation3 + $0x18] sm:$0xf] %v270
    %v277 = vld [vmem:[#allocation2] sm:$0xff]
    %v278 = vld [vmem:[#allocation2 + $0x8] sm:$0xff]
    %v279 = vld [vmem:[#allocation2 + $0x10] sm:$0xf]
    %s280 = scalar_lea.vmem %s1, 1
    %v281 = vld [vmem:[%s280] ss:$8 sm:$0xf]
    %v283 = vlaneseq
    %v284 = vshrl.u32 %v283, 7
    %v285 = vsub.s32 0, %v284
    %v286 = vrot.slane %v281, %v285
    %v287 = vlaneseq
    %v288 = vshrl.u32 %v287, 7
    %v289 = vsub.s32 1, %v288
    %v290 = vrot.slane %v281, %v289
    %v291 = vlaneseq
    %v292 = vshrl.u32 %v291, 7
    %v293 = vsub.s32 2, %v292
    %v294 = vrot.slane %v281, %v293
    %v295 = vlaneseq
    %v296 = vshrl.u32 %v295, 7
    %v297 = vsub.s32 3, %v296
    %v298 = vrot.slane %v281, %v297
    %v299 = vcombine.low %v286, %v290
    %v300 = vcombine.low %v294, %v298
    %301 = vrot.lane.b32.xlu0 %v299, 2
    %v302 = vpop.permute.xlu0 %301
    %303 = vrot.lane.b32.xlu0 %v300, 2
    %v304 = vpop.permute.xlu0 %303
    %v305 = vrot.slane %v302, 4
    %v306 = vrot.slane %v304, 4
    %vm307 = vcmask 15360
    %v308 = vsel %vm307, %v305, %v302
    %v309 = vsel %vm155, %v305, %v306
    %v310 = vsel %vm307, %v309, %v304
    %v314 = vmul.f32 %v277, %v308
    %v315 = vmul.f32 %v278, %v310
    %v316 = vmul.f32 %v279, %v306
    %v320 = vcombine.low %v314, %v314
    %v321 = vcombine.low %v315, %v315
    %v322 = vcombine.low %v316, %v316
    %323 = vrot.lane.b32.xlu0 %v320, 126
    %v324 = vpop.permute.xlu0 %323
    %325 = vrot.lane.b32.xlu0 %v314, 126
    %v326 = vpop.permute.xlu0 %325
    %327 = vrot.lane.b32.xlu0 %v321, 126
    %v328 = vpop.permute.xlu0 %327
    %329 = vrot.lane.b32.xlu0 %v315, 126
    %v330 = vpop.permute.xlu0 %329
    %331 = vrot.lane.b32.xlu0 %v322, 126
    %v332 = vpop.permute.xlu0 %331
    %vm333 = vcmask 1031168
    %v334 = vsel %vm333, %v324, %v326
    %v335 = vsel %vm333, %v326, %v328
    %v336 = vsel %vm333, %v328, %v330
    %v337 = vsel %vm333, %v330, %v332
    %342 = vst [vmem:[#allocation3] sm:$0xf0] %v334
    %343 = vst [vmem:[#allocation3 + $0x8] sm:$0xf0] %v335
    %344 = vst [vmem:[#allocation3 + $0x10] sm:$0xf0] %v336
    %345 = vst [vmem:[#allocation3 + $0x18] sm:$0xf0] %v337
    %v346 = vld [vmem:[#allocation2] sm:$0xff]
    %v347 = vld [vmem:[#allocation2 + $0x8] sm:$0xff]
    %v348 = vld [vmem:[#allocation2 + $0x10] sm:$0xf]
    %s349 = scalar_lea.vmem %s1, 2
    %v350 = vld [vmem:[%s349] ss:$8 sm:$0xf]
    %v352 = vlaneseq
    %v353 = vshrl.u32 %v352, 7
    %v354 = vsub.s32 0, %v353
    %v355 = vrot.slane %v350, %v354
    %v356 = vlaneseq
    %v357 = vshrl.u32 %v356, 7
    %v358 = vsub.s32 1, %v357
    %v359 = vrot.slane %v350, %v358
    %v360 = vlaneseq
    %v361 = vshrl.u32 %v360, 7
    %v362 = vsub.s32 2, %v361
    %v363 = vrot.slane %v350, %v362
    %v364 = vlaneseq
    %v365 = vshrl.u32 %v364, 7
    %v366 = vsub.s32 3, %v365
    %v367 = vrot.slane %v350, %v366
    %v368 = vcombine.low %v355, %v359
    %v369 = vcombine.low %v363, %v367
    %370 = vrot.lane.b32.xlu0 %v368, 4
    %v371 = vpop.permute.xlu0 %370
    %372 = vrot.lane.b32.xlu0 %v369, 4
    %v373 = vpop.permute.xlu0 %372
    %v374 = vrot.slane %v371, 4
    %v375 = vrot.slane %v373, 4
    %vm376 = vcmask 31744
    %v377 = vsel %vm376, %v374, %v371
    %v378 = vsel %vm155, %v374, %v375
    %v379 = vsel %vm376, %v378, %v373
    %v383 = vmul.f32 %v346, %v377
    %v384 = vmul.f32 %v347, %v379
    %v385 = vmul.f32 %v348, %v375
    %v389 = vcombine.high %v383, %v383
    %v390 = vcombine.high %v384, %v384
    %391 = vrot.lane.b32.xlu0 %v383, 124
    %v392 = vpop.permute.xlu0 %391
    %393 = vrot.lane.b32.xlu0 %v389, 124
    %v394 = vpop.permute.xlu0 %393
    %395 = vrot.lane.b32.xlu0 %v384, 124
    %v396 = vpop.permute.xlu0 %395
    %397 = vrot.lane.b32.xlu0 %v390, 124
    %v398 = vpop.permute.xlu0 %397
    %399 = vrot.lane.b32.xlu0 %v385, 124
    %v400 = vpop.permute.xlu0 %399
    %vm401 = vcmask 1014784
    %v402 = vsel %vm401, %v392, %v394
    %v403 = vsel %vm401, %v394, %v396
    %v404 = vsel %vm401, %v396, %v398
    %v405 = vsel %vm401, %v398, %v400
    %410 = vst [vmem:[#allocation3 + $0x20] sm:$0xf] %v402
    %411 = vst [vmem:[#allocation3 + $0x28] sm:$0xf] %v403
    %412 = vst [vmem:[#allocation3 + $0x30] sm:$0xf] %v404
    %413 = vst [vmem:[#allocation3 + $0x38] sm:$0xf] %v405
    %v414 = vld [vmem:[#allocation2] sm:$0xff]
    %v415 = vld [vmem:[#allocation2 + $0x8] sm:$0xff]
    %v416 = vld [vmem:[#allocation2 + $0x10] sm:$0xf]
    %s417 = scalar_lea.vmem %s1, 3
    %v418 = vld [vmem:[%s417] ss:$8 sm:$0xf]
    %v420 = vlaneseq
    %v421 = vshrl.u32 %v420, 7
    %v422 = vsub.s32 0, %v421
    %v423 = vrot.slane %v418, %v422
    %v424 = vlaneseq
    %v425 = vshrl.u32 %v424, 7
    %v426 = vsub.s32 1, %v425
    %v427 = vrot.slane %v418, %v426
    %v428 = vlaneseq
    %v429 = vshrl.u32 %v428, 7
    %v430 = vsub.s32 2, %v429
    %v431 = vrot.slane %v418, %v430
    %v432 = vlaneseq
    %v433 = vshrl.u32 %v432, 7
    %v434 = vsub.s32 3, %v433
    %v435 = vrot.slane %v418, %v434
    %v436 = vcombine.low %v423, %v427
    %v437 = vcombine.low %v431, %v435
    %438 = vrot.lane.b32.xlu0 %v436, 32
    %v439 = vpop.permute.xlu0 %438
    %440 = vrot.lane.b32.xlu0 %v437, 32
    %v441 = vpop.permute.xlu0 %440
    %v442 = vrot.slane %v439, 4
    %v443 = vrot.slane %v441, 4
    %vm444 = vcmask 261120
    %v445 = vsel %vm444, %v442, %v439
    %v446 = vsel %vm155, %v442, %v443
    %v447 = vsel %vm444, %v446, %v441
    %v451 = vmul.f32 %v414, %v445
    %v452 = vmul.f32 %v415, %v447
    %v453 = vmul.f32 %v416, %v443
    %v457 = vcombine.low %v451, %v451
    %v458 = vcombine.low %v452, %v452
    %v459 = vcombine.low %v453, %v453
    %460 = vrot.lane.b32.xlu0 %v457, 96
    %v461 = vpop.permute.xlu0 %460
    %462 = vrot.lane.b32.xlu0 %v451, 96
    %v463 = vpop.permute.xlu0 %462
    %464 = vrot.lane.b32.xlu0 %v458, 96
    %v465 = vpop.permute.xlu0 %464
    %466 = vrot.lane.b32.xlu0 %v452, 96
    %v467 = vpop.permute.xlu0 %466
    %468 = vrot.lane.b32.xlu0 %v459, 96
    %v469 = vpop.permute.xlu0 %468
    %vm470 = vcmask 785408
    %v471 = vsel %vm470, %v461, %v463
    %v472 = vsel %vm470, %v463, %v465
    %v473 = vsel %vm470, %v465, %v467
    %v474 = vsel %vm470, %v467, %v469
    %479 = vst [vmem:[#allocation3 + $0x20] sm:$0xf0] %v471
    %480 = vst [vmem:[#allocation3 + $0x28] sm:$0xf0] %v472
    %481 = vst [vmem:[#allocation3 + $0x30] sm:$0xf0] %v473
    %482 = vst [vmem:[#allocation3 + $0x38] sm:$0xf0] %v474
    %v483 = vld [vmem:[#allocation2] sm:$0xff]
    %v484 = vld [vmem:[#allocation2 + $0x8] sm:$0xff]
    %v485 = vld [vmem:[#allocation2 + $0x10] sm:$0xf]
    %s486 = scalar_lea.vmem %s1, 4
    %v487 = vld [vmem:[%s486] ss:$8 sm:$0xf]
    %v489 = vlaneseq
    %v490 = vshrl.u32 %v489, 7
    %v491 = vsub.s32 0, %v490
    %v492 = vrot.slane %v487, %v491
    %v493 = vlaneseq
    %v494 = vshrl.u32 %v493, 7
    %v495 = vsub.s32 1, %v494
    %v496 = vrot.slane %v487, %v495
    %v497 = vlaneseq
    %v498 = vshrl.u32 %v497, 7
    %v499 = vsub.s32 2, %v498
    %v500 = vrot.slane %v487, %v499
    %v501 = vlaneseq
    %v502 = vshrl.u32 %v501, 7
    %v503 = vsub.s32 3, %v502
    %v504 = vrot.slane %v487, %v503
    %v505 = vcombine.low %v492, %v496
    %v506 = vcombine.low %v500, %v504
    %507 = vrot.lane.b32.xlu0 %v505, 34
    %v508 = vpop.permute.xlu0 %507
    %509 = vrot.lane.b32.xlu0 %v506, 34
    %v510 = vpop.permute.xlu0 %509
    %v511 = vrot.slane %v508, 4
    %v512 = vrot.slane %v510, 4
    %v513 = vsel %vm228, %v511, %v508
    %v514 = vsel %vm155, %v511, %v512
    %v515 = vsel %vm228, %v514, %v510
    %v519 = vmul.f32 %v483, %v513
    %v520 = vmul.f32 %v484, %v515
    %v521 = vmul.f32 %v485, %v512
    %v525 = vcombine.high %v519, %v519
    %v526 = vcombine.high %v520, %v520
    %527 = vrot.lane.b32.xlu0 %v519, 94
    %v528 = vpop.permute.xlu0 %527
    %529 = vrot.lane.b32.xlu0 %v525, 94
    %v530 = vpop.permute.xlu0 %529
    %531 = vrot.lane.b32.xlu0 %v520, 94
    %v532 = vpop.permute.xlu0 %531
    %533 = vrot.lane.b32.xlu0 %v526, 94
    %v534 = vpop.permute.xlu0 %533
    %535 = vrot.lane.b32.xlu0 %v521, 94
    %v536 = vpop.permute.xlu0 %535
    %vm537 = vcmask 769024
    %v538 = vsel %vm537, %v528, %v530
    %v539 = vsel %vm537, %v530, %v532
    %v540 = vsel %vm537, %v532, %v534
    %v541 = vsel %vm537, %v534, %v536
    %546 = vst [vmem:[#allocation3 + $0x40] sm:$0xf] %v538
    %547 = vst [vmem:[#allocation3 + $0x48] sm:$0xf] %v539
    %548 = vst [vmem:[#allocation3 + $0x50] sm:$0xf] %v540
    %549 = vst [vmem:[#allocation3 + $0x58] sm:$0xf] %v541
    %v550 = vld [vmem:[#allocation2] sm:$0xff]
    %v551 = vld [vmem:[#allocation2 + $0x8] sm:$0xff]
    %v552 = vld [vmem:[#allocation2 + $0x10] sm:$0xf]
    %s553 = scalar_lea.vmem %s1, 5
    %v554 = vld [vmem:[%s553] ss:$8 sm:$0xf]
    %v556 = vlaneseq
    %v557 = vshrl.u32 %v556, 7
    %v558 = vsub.s32 0, %v557
    %v559 = vrot.slane %v554, %v558
    %v560 = vlaneseq
    %v561 = vshrl.u32 %v560, 7
    %v562 = vsub.s32 1, %v561
    %v563 = vrot.slane %v554, %v562
    %v564 = vlaneseq
    %v565 = vshrl.u32 %v564, 7
    %v566 = vsub.s32 2, %v565
    %v567 = vrot.slane %v554, %v566
    %v568 = vlaneseq
    %v569 = vshrl.u32 %v568, 7
    %v570 = vsub.s32 3, %v569
    %v571 = vrot.slane %v554, %v570
    %v572 = vcombine.low %v559, %v563
    %v573 = vcombine.low %v567, %v571
    %574 = vrot.lane.b32.xlu0 %v572, 36
    %v575 = vpop.permute.xlu0 %574
    %576 = vrot.lane.b32.xlu0 %v573, 36
    %v577 = vpop.permute.xlu0 %576
    %v578 = vrot.slane %v575, 4
    %v579 = vrot.slane %v577, 4
    %vm580 = vcmask 293888
    %v581 = vsel %vm580, %v578, %v575
    %v582 = vsel %vm155, %v578, %v579
    %v583 = vsel %vm580, %v582, %v577
    %v587 = vmul.f32 %v550, %v581
    %v588 = vmul.f32 %v551, %v583
    %v589 = vmul.f32 %v552, %v579
    %v593 = vcombine.low %v587, %v587
    %v594 = vcombine.low %v588, %v588
    %v595 = vcombine.low %v589, %v589
    %596 = vrot.lane.b32.xlu0 %v593, 92
    %v597 = vpop.permute.xlu0 %596
    %598 = vrot.lane.b32.xlu0 %v587, 92
    %v599 = vpop.permute.xlu0 %598
    %600 = vrot.lane.b32.xlu0 %v594, 92
    %v601 = vpop.permute.xlu0 %600
    %602 = vrot.lane.b32.xlu0 %v588, 92
    %v603 = vpop.permute.xlu0 %602
    %604 = vrot.lane.b32.xlu0 %v595, 92
    %v605 = vpop.permute.xlu0 %604
    %vm606 = vcmask 752640
    %v607 = vsel %vm606, %v597, %v599
    %v608 = vsel %vm606, %v599, %v601
    %v609 = vsel %vm606, %v601, %v603
    %v610 = vsel %vm606, %v603, %v605
    %615 = vst [vmem:[#allocation3 + $0x40] sm:$0xf0] %v607
    %616 = vst [vmem:[#allocation3 + $0x48] sm:$0xf0] %v608
    %617 = vst [vmem:[#allocation3 + $0x50] sm:$0xf0] %v609
    %618 = vst [vmem:[#allocation3 + $0x58] sm:$0xf0] %v610
    %v619 = vld [vmem:[#allocation2] sm:$0xff]
    %v620 = vld [vmem:[#allocation2 + $0x8] sm:$0xff]
    %v621 = vld [vmem:[#allocation2 + $0x10] sm:$0xf]
    %s622 = scalar_lea.vmem %s1, 6
    %v623 = vld [vmem:[%s622] ss:$8 sm:$0xf]
    %v625 = vlaneseq
    %v626 = vshrl.u32 %v625, 7
    %v627 = vsub.s32 0, %v626
    %v628 = vrot.slane %v623, %v627
    %v629 = vlaneseq
    %v630 = vshrl.u32 %v629, 7
    %v631 = vsub.s32 1, %v630
    %v632 = vrot.slane %v623, %v631
    %v633 = vlaneseq
    %v634 = vshrl.u32 %v633, 7
    %v635 = vsub.s32 2, %v634
    %v636 = vrot.slane %v623, %v635
    %v637 = vlaneseq
    %v638 = vshrl.u32 %v637, 7
    %v639 = vsub.s32 3, %v638
    %v640 = vrot.slane %v623, %v639
    %v641 = vcombine.low %v628, %v632
    %v642 = vcombine.low %v636, %v640
    %643 = vrot.lane.b32.xlu0 %v641, 64
    %v644 = vpop.permute.xlu0 %643
    %645 = vrot.lane.b32.xlu0 %v642, 64
    %v646 = vpop.permute.xlu0 %645
    %v647 = vrot.slane %v644, 4
    %v648 = vrot.slane %v646, 4
    %vm649 = vcmask 523264
    %v650 = vsel %vm649, %v647, %v644
    %v651 = vsel %vm155, %v647, %v648
    %v652 = vsel %vm649, %v651, %v646
    %v656 = vmul.f32 %v619, %v650
    %v657 = vmul.f32 %v620, %v652
    %v658 = vmul.f32 %v621, %v648
    %v662 = vcombine.high %v656, %v656
    %v663 = vcombine.high %v657, %v657
    %664 = vrot.lane.b32.xlu0 %v656, 64
    %v665 = vpop.permute.xlu0 %664
    %666 = vrot.lane.b32.xlu0 %v662, 64
    %v667 = vpop.permute.xlu0 %666
    %668 = vrot.lane.b32.xlu0 %v657, 64
    %v669 = vpop.permute.xlu0 %668
    %670 = vrot.lane.b32.xlu0 %v663, 64
    %v671 = vpop.permute.xlu0 %670
    %672 = vrot.lane.b32.xlu0 %v658, 64
    %v673 = vpop.permute.xlu0 %672
    %v674 = vsel %vm649, %v665, %v667
    %v675 = vsel %vm649, %v667, %v669
    %v676 = vsel %vm649, %v669, %v671
    %v677 = vsel %vm649, %v671, %v673
    %682 = vst [vmem:[#allocation3 + $0x60] sm:$0xf] %v674
    %683 = vst [vmem:[#allocation3 + $0x68] sm:$0xf] %v675
    %684 = vst [vmem:[#allocation3 + $0x70] sm:$0xf] %v676
    %685 = vst [vmem:[#allocation3 + $0x78] sm:$0xf] %v677
    %v686 = vld [vmem:[#allocation2] sm:$0xff]
    %v687 = vld [vmem:[#allocation2 + $0x8] sm:$0xff]
    %v688 = vld [vmem:[#allocation2 + $0x10] sm:$0xf]
    %s689 = scalar_lea.vmem %s1, 7
    %v690 = vld [vmem:[%s689] ss:$8 sm:$0xf]
    %v692 = vlaneseq
    %v693 = vshrl.u32 %v692, 7
    %v694 = vsub.s32 0, %v693
    %v695 = vrot.slane %v690, %v694
    %v696 = vlaneseq
    %v697 = vshrl.u32 %v696, 7
    %v698 = vsub.s32 1, %v697
    %v699 = vrot.slane %v690, %v698
    %v700 = vlaneseq
    %v701 = vshrl.u32 %v700, 7
    %v702 = vsub.s32 2, %v701
    %v703 = vrot.slane %v690, %v702
    %v704 = vlaneseq
    %v705 = vshrl.u32 %v704, 7
    %v706 = vsub.s32 3, %v705
    %v707 = vrot.slane %v690, %v706
    %v708 = vcombine.low %v695, %v699
    %v709 = vcombine.low %v703, %v707
    %710 = vrot.lane.b32.xlu0 %v708, 66
    %v711 = vpop.permute.xlu0 %710
    %712 = vrot.lane.b32.xlu0 %v709, 66
    %v713 = vpop.permute.xlu0 %712
    %v714 = vrot.slane %v711, 4
    %v715 = vrot.slane %v713, 4
    %vm716 = vcmask 539648
    %v717 = vsel %vm716, %v714, %v711
    %v718 = vsel %vm155, %v714, %v715
    %v719 = vsel %vm716, %v718, %v713
    %v723 = vmul.f32 %v686, %v717
    %v724 = vmul.f32 %v687, %v719
    %v725 = vmul.f32 %v688, %v715
    %v729 = vcombine.low %v723, %v723
    %v730 = vcombine.low %v724, %v724
    %v731 = vcombine.low %v725, %v725
    %732 = vrot.lane.b32.xlu0 %v729, 62
    %v733 = vpop.permute.xlu0 %732
    %734 = vrot.lane.b32.xlu0 %v723, 62
    %v735 = vpop.permute.xlu0 %734
    %736 = vrot.lane.b32.xlu0 %v730, 62
    %v737 = vpop.permute.xlu0 %736
    %738 = vrot.lane.b32.xlu0 %v724, 62
    %v739 = vpop.permute.xlu0 %738
    %740 = vrot.lane.b32.xlu0 %v731, 62
    %v741 = vpop.permute.xlu0 %740
    %vm742 = vcmask 506880
    %v743 = vsel %vm742, %v733, %v735
    %v744 = vsel %vm742, %v735, %v737
    %v745 = vsel %vm742, %v737, %v739
    %v746 = vsel %vm742, %v739, %v741
    %751 = vst [vmem:[#allocation3 + $0x60] sm:$0xf0] %v743
    %752 = vst [vmem:[#allocation3 + $0x68] sm:$0xf0] %v744
    %753 = vst [vmem:[#allocation3 + $0x70] sm:$0xf0] %v745
    %754 = vst [vmem:[#allocation3 + $0x78] sm:$0xf0] %v746
    %v755 = vld [vmem:[#allocation2] sm:$0xff]
    %v756 = vld [vmem:[#allocation2 + $0x8] sm:$0xff]
    %v757 = vld [vmem:[#allocation2 + $0x10] sm:$0xf]
    %s758 = scalar_lea.vmem %s1, 32
    %v759 = vld [vmem:[%s758] ss:$8 sm:$0xf]
    %v761 = vlaneseq
    %v762 = vshrl.u32 %v761, 7
    %v763 = vsub.s32 0, %v762
    %v764 = vrot.slane %v759, %v763
    %v765 = vlaneseq
    %v766 = vshrl.u32 %v765, 7
    %v767 = vsub.s32 1, %v766
    %v768 = vrot.slane %v759, %v767
    %v769 = vlaneseq
    %v770 = vshrl.u32 %v769, 7
    %v771 = vsub.s32 2, %v770
    %v772 = vrot.slane %v759, %v771
    %v773 = vlaneseq
    %v774 = vshrl.u32 %v773, 7
    %v775 = vsub.s32 3, %v774
    %v776 = vrot.slane %v759, %v775
    %v777 = vcombine.low %v764, %v768
    %v778 = vcombine.low %v772, %v776
    %779 = vrot.lane.b32.xlu0 %v777, 68
    %v780 = vpop.permute.xlu0 %779
    %781 = vrot.lane.b32.xlu0 %v778, 68
    %v782 = vpop.permute.xlu0 %781
    %v783 = vrot.slane %v780, 4
    %v784 = vrot.slane %v782, 4
    %vm785 = vcmask 556032
    %v786 = vsel %vm785, %v783, %v780
    %v787 = vsel %vm155, %v783, %v784
    %v788 = vsel %vm785, %v787, %v782
    %v792 = vmul.f32 %v755, %v786
    %v793 = vmul.f32 %v756, %v788
    %v794 = vmul.f32 %v757, %v784
    %v798 = vcombine.high %v792, %v792
    %v799 = vcombine.high %v793, %v793
    %800 = vrot.lane.b32.xlu0 %v792, 60
    %v801 = vpop.permute.xlu0 %800
    %802 = vrot.lane.b32.xlu0 %v798, 60
    %v803 = vpop.permute.xlu0 %802
    %804 = vrot.lane.b32.xlu0 %v793, 60
    %v805 = vpop.permute.xlu0 %804
    %806 = vrot.lane.b32.xlu0 %v799, 60
    %v807 = vpop.permute.xlu0 %806
    %808 = vrot.lane.b32.xlu0 %v794, 60
    %v809 = vpop.permute.xlu0 %808
    %vm810 = vcmask 490496
    %v811 = vsel %vm810, %v801, %v803
    %v812 = vsel %vm810, %v803, %v805
    %v813 = vsel %vm810, %v805, %v807
    %v814 = vsel %vm810, %v807, %v809
    %819 = vst [vmem:[#allocation3 + $0x80] sm:$0xf] %v811
    %820 = vst [vmem:[#allocation3 + $0x88] sm:$0xf] %v812
    %821 = vst [vmem:[#allocation3 + $0x90] sm:$0xf] %v813
    %822 = vst [vmem:[#allocation3 + $0x98] sm:$0xf] %v814
    %v823 = vld [vmem:[%s5] sm:$0x3]
    %v824 = vld [vmem:[#allocation3] sm:$0xff]
    %v825 = vld [vmem:[#allocation3 + $0x8] sm:$0xff]
    %v826 = vld [vmem:[#allocation3 + $0x10] sm:$0xff]
    %v827 = vld [vmem:[#allocation3 + $0x18] sm:$0xff]
    %v828 = vld [vmem:[#allocation3 + $0x20] sm:$0xff]
    %v829 = vld [vmem:[#allocation3 + $0x28] sm:$0xff]
    %v830 = vld [vmem:[#allocation3 + $0x30] sm:$0xff]
    %v831 = vld [vmem:[#allocation3 + $0x38] sm:$0xff]
    %v832 = vld [vmem:[#allocation3 + $0x40] sm:$0xff]
    %v833 = vld [vmem:[#allocation3 + $0x48] sm:$0xff]
    %v834 = vld [vmem:[#allocation3 + $0x50] sm:$0xff]
    %v835 = vld [vmem:[#allocation3 + $0x58] sm:$0xff]
    %v836 = vld [vmem:[#allocation3 + $0x60] sm:$0xff]
    %v837 = vld [vmem:[#allocation3 + $0x68] sm:$0xff]
    %v838 = vld [vmem:[#allocation3 + $0x70] sm:$0xff]
    %v839 = vld [vmem:[#allocation3 + $0x78] sm:$0xff]
    %v840 = vld [vmem:[#allocation3 + $0x80] sm:$0xf]
    %v841 = vld [vmem:[#allocation3 + $0x88] sm:$0xf]
    %v842 = vld [vmem:[#allocation3 + $0x90] sm:$0xf]
    %v843 = vld [vmem:[#allocation3 + $0x98] sm:$0xf]
    %v844 = vpack.c.bf16 %v828, %v824
    %v845 = vpack.c.bf16 %v829, %v825
    %v846 = vpack.c.bf16 %v830, %v826
    %v847 = vpack.c.bf16 %v831, %v827
    %v848 = vpack.c.bf16 %v836, %v832
    %v849 = vpack.c.bf16 %v837, %v833
    %v850 = vpack.c.bf16 %v838, %v834
    %v851 = vpack.c.bf16 %v839, %v835
    %v852 = vpack.c.bf16 %v840, %v840
    %v853 = vpack.c.bf16 %v841, %v841
    %v854 = vpack.c.bf16 %v842, %v842
    %v855 = vpack.c.bf16 %v843, %v843
    %v857 = vsel %vm580, %v823, 0
    %vm859 = vcmask 1041408
    %v861 = vsel %vm859, %v852, 0
    %v864 = vsel %vm859, %v853, 0
    %v867 = vsel %vm859, %v854, 0
    %v870 = vsel %vm859, %v855, 0
    %872 = vmatprep.subr.bf16.mxu0 %v845
    %873 = vmatpush1.bf16.msra.mxu0 %v844
    %874 = vmatprep.subr.bf16.mxu0 %v849
    %875 = vmatpush1.bf16.msra.mxu0 %v848
    %876 = vmatprep.subr.bf16.mxu0 %v864
    %877 = vmatpush1.bf16.msra.mxu0 %v861
    %878 = vmatprep.subr.bf16.mxu0 0
    %879 = vmatpush1.bf16.msra.mxu0 0
    %880 = vmatprep.subr.bf16.mxu0 0
    %881 = vmatpush1.bf16.msra.mxu0 0
    %882 = vmatprep.subr.bf16.mxu0 0
    %883 = vmatpush1.bf16.msra.mxu0 0
    %884 = vmatprep.subr.bf16.mxu0 0
    %885 = vmatpush1.bf16.msra.mxu0 0
    %886 = vmatprep.subr.bf16.mxu0 0
    %887 = vmatpush1.bf16.msra.mxu0 0
    %888 = vmatprep.subr.bf16.mxu0 0
    %889 = vmatpush1.bf16.msra.mxu0 0
    %890 = vmatprep.subr.bf16.mxu0 0
    %891 = vmatpush1.bf16.msra.mxu0 0
    %892 = vmatprep.subr.bf16.mxu0 0
    %893 = vmatpush1.bf16.msra.mxu0 0
    %894 = vmatprep.subr.bf16.mxu0 0
    %895 = vmatpush1.bf16.msra.mxu0 0
    %896 = vmatprep.subr.bf16.mxu0 0
    %897 = vmatpush1.bf16.msra.mxu0 0
    %898 = vmatprep.subr.bf16.mxu0 0
    %899 = vmatpush1.bf16.msra.mxu0 0
    %900 = vmatprep.subr.bf16.mxu0 0
    %901 = vmatpush1.bf16.msra.mxu0 0
    %902 = vmatprep.subr.bf16.mxu0 0
    %903 = vmatpush1.bf16.msra.mxu0 0
    %904 = vmatprep.mubr.bf16.mxu0 0
    %905 = vmatmul.mubr.bf16.gmra.mrb[0].mxu0 %v857
    %v906 = vpop.f32.mrb[0].mxu0
    %v907 = vadd.f32 0.0, %v906
    %v908 = vpop.f32.mrb[0].mxu0
    %v909 = vadd.f32 0.0, %v908
    %v910 = vpop.f32.mrb[0].mxu0
    %v911 = vpop.f32.mrb[0].mxu0
    %912 = vdwg.mxu0
    %913 = vmatprep.subr.bf16.mxu0 %v847
    %914 = vmatpush1.bf16.msra.mxu0 %v846
    %915 = vmatprep.subr.bf16.mxu0 %v851
    %916 = vmatpush1.bf16.msra.mxu0 %v850
    %917 = vmatprep.subr.bf16.mxu0 %v870
    %918 = vmatpush1.bf16.msra.mxu0 %v867
    %919 = vmatprep.subr.bf16.mxu0 0
    %920 = vmatpush1.bf16.msra.mxu0 0
    %921 = vmatprep.subr.bf16.mxu0 0
    %922 = vmatpush1.bf16.msra.mxu0 0
    %923 = vmatprep.subr.bf16.mxu0 0
    %924 = vmatpush1.bf16.msra.mxu0 0
    %925 = vmatprep.subr.bf16.mxu0 0
    %926 = vmatpush1.bf16.msra.mxu0 0
    %927 = vmatprep.subr.bf16.mxu0 0
    %928 = vmatpush1.bf16.msra.mxu0 0
    %929 = vmatprep.subr.bf16.mxu0 0
    %930 = vmatpush1.bf16.msra.mxu0 0
    %931 = vmatprep.subr.bf16.mxu0 0
    %932 = vmatpush1.bf16.msra.mxu0 0
    %933 = vmatprep.subr.bf16.mxu0 0
    %934 = vmatpush1.bf16.msra.mxu0 0
    %935 = vmatprep.subr.bf16.mxu0 0
    %936 = vmatpush1.bf16.msra.mxu0 0
    %937 = vmatprep.subr.bf16.mxu0 0
    %938 = vmatpush1.bf16.msra.mxu0 0
    %939 = vmatprep.subr.bf16.mxu0 0
    %940 = vmatpush1.bf16.msra.mxu0 0
    %941 = vmatprep.subr.bf16.mxu0 0
    %942 = vmatpush1.bf16.msra.mxu0 0
    %943 = vmatprep.subr.bf16.mxu0 0
    %944 = vmatpush1.bf16.msra.mxu0 0
    %945 = vmatprep.mubr.bf16.mxu0 0
    %946 = vmatmul.mubr.bf16.gmra.mrb[0].mxu0 %v857
    %v947 = vpop.f32.mrb[0].mxu0
    %v948 = vadd.f32 0.0, %v947
    %v949 = vpop.f32.mrb[0].mxu0
    %v950 = vadd.f32 0.0, %v949
    %v951 = vpop.f32.mrb[0].mxu0
    %v952 = vpop.f32.mrb[0].mxu0
    %953 = vdwg.mxu0
    %v954 = vld [vmem:[%s6] sm:$0xf]
    %v955 = vld [vmem:[%s7] sm:$0xf]
    %v956 = vsel %vm155, %v907, 0.0
    %v957 = vsel %vm155, %v909, 0.0
    %v958 = vadd.f32 %v956, %v957
    %v959 = vsel %vm155, %v948, 0.0
    %v960 = vadd.f32 %v958, %v959
    %v961 = vsel %vm155, %v950, 0.0
    %v962 = vadd.f32 %v960, %v961
    %963 = vadd.xlane.f32.xlu0 %v962
    %v964 = vpop.xlane.xlu0 %963
    %v965 = vmul.f32 %v964, %v165
    %v966 = vsub.f32 %v907, %v965
    %v967 = vsub.f32 %v909, %v965
    %v968 = vsub.f32 %v948, %v965
    %v969 = vsub.f32 %v950, %v965
    %v970 = vmul.f32 %v966, %v966
    %v971 = vmul.f32 %v967, %v967
    %v972 = vmul.f32 %v968, %v968
    %v973 = vmul.f32 %v969, %v969
    %v974 = vsel %vm155, %v970, 0.0
    %v975 = vsel %vm155, %v971, 0.0
    %v976 = vadd.f32 %v974, %v975
    %v977 = vsel %vm155, %v972, 0.0
    %v978 = vadd.f32 %v976, %v977
    %v979 = vsel %vm155, %v973, 0.0
    %v980 = vadd.f32 %v978, %v979
    %981 = vadd.xlane.f32.xlu0 %v980
    %v982 = vpop.xlane.xlu0 %981
    %v983 = vmul.f32 %v982, %v165
    %v984 = vadd.f32 %v983, 1e-05
    %v985 = vrsqrt.pop %v984
    %v986 = vmul.f32 %v954, %v985
    %988 = vset.pattern.permute.xlu0 0
    %989 = vperm.xlu0 %988, %v986
    %v990 = vpop.permute.xlu0 %989
    %v992 = vmul.f32 %v907, %v990
    %v993 = vmul.f32 %v909, %v990
    %v994 = vmul.f32 %v948, %v990
    %v995 = vmul.f32 %v950, %v990
    %v996 = vmul.f32 %v965, %v986
    %v997 = vsub.f32 %v955, %v996
    %999 = vset.pattern.permute.xlu0 0
    %1000 = vperm.xlu0 %999, %v997
    %v1001 = vpop.permute.xlu0 %1000
    %v1003 = vadd.f32 %v992, %v1001
    %v1004 = vadd.f32 %v993, %v1001
    %v1005 = vadd.f32 %v994, %v1001
    %v1006 = vadd.f32 %v995, %v1001
    %v1007 = vmax.f32 %v1003, 0.0
    %v1008 = vmax.f32 %v1004, 0.0
    %v1009 = vmax.f32 %v1005, 0.0
    %v1010 = vmax.f32 %v1006, 0.0
    %v1011 = vld [vmem:[%s8] sm:$0xf]
    %v1012 = vld [vmem:[%s8 + $0x4] sm:$0xf]
    %v1013 = vpack.c.bf16 %v1007, %v1007
    %v1014 = vpack.c.bf16 %v1008, %v1008
    %v1015 = vpack.c.bf16 %v1009, %v1009
    %v1016 = vpack.c.bf16 %v1010, %v1010
    %v1019 = vunpack.c.l.b16 %v1011
    %v1020 = vunpack.c.l.b16 %v1012
    %v1021 = vpack.c.b16 %v1020, %v1019
    %v1023 = vsel %vm376, %v1021, 0
    %v1026 = vsel %vm859, %v1013, 0
    %v1029 = vsel %vm859, %v1014, 0
    %v1032 = vsel %vm859, %v1015, 0
    %v1035 = vsel %vm859, %v1016, 0
    %1037 = vmatprep.subr.bf16.mxu0 %v1029
    %1038 = vmatpush1.bf16.msra.mxu0 %v1026
    %1039 = vmatprep.subr.bf16.mxu0 0
    %1040 = vmatpush1.bf16.msra.mxu0 0
    %1041 = vmatprep.subr.bf16.mxu0 0
    %1042 = vmatpush1.bf16.msra.mxu0 0
    %1043 = vmatprep.subr.bf16.mxu0 0
    %1044 = vmatpush1.bf16.msra.mxu0 0
    %1045 = vmatprep.subr.bf16.mxu0 0
    %1046 = vmatpush1.bf16.msra.mxu0 0
    %1047 = vmatprep.subr.bf16.mxu0 0
    %1048 = vmatpush1.bf16.msra.mxu0 0
    %1049 = vmatprep.subr.bf16.mxu0 0
    %1050 = vmatpush1.bf16.msra.mxu0 0
    %1051 = vmatprep.subr.bf16.mxu0 0
    %1052 = vmatpush1.bf16.msra.mxu0 0
    %1053 = vmatprep.subr.bf16.mxu0 0
    %1054 = vmatpush1.bf16.msra.mxu0 0
    %1055 = vmatprep.subr.bf16.mxu0 0
    %1056 = vmatpush1.bf16.msra.mxu0 0
    %1057 = vmatprep.subr.bf16.mxu0 0
    %1058 = vmatpush1.bf16.msra.mxu0 0
    %1059 = vmatprep.subr.bf16.mxu0 0
    %1060 = vmatpush1.bf16.msra.mxu0 0
    %1061 = vmatprep.subr.bf16.mxu0 0
    %1062 = vmatpush1.bf16.msra.mxu0 0
    %1063 = vmatprep.subr.bf16.mxu0 0
    %1064 = vmatpush1.bf16.msra.mxu0 0
    %1065 = vmatprep.subr.bf16.mxu0 0
    %1066 = vmatpush1.bf16.msra.mxu0 0
    %1067 = vmatprep.subr.bf16.mxu0 0
    %1068 = vmatpush1.bf16.msra.mxu0 0
    %1069 = vmatprep.mubr.bf16.mxu0 0
    %1070 = vmatmul.mubr.bf16.gmra.mrb[0].mxu0 %v1023
    %v1071 = vpop.f32.mrb[0].mxu0
    %v1072 = vadd.f32 0.0, %v1071
    %v1073 = vpop.f32.mrb[0].mxu0
    %v1074 = vadd.f32 0.0, %v1073
    %v1075 = vpop.f32.mrb[0].mxu0
    %v1076 = vadd.f32 0.0, %v1075
    %v1077 = vpop.f32.mrb[0].mxu0
    %v1078 = vadd.f32 0.0, %v1077
    %1079 = vdwg.mxu0
    %1080 = vmatprep.subr.bf16.mxu0 %v1035
    %1081 = vmatpush1.bf16.msra.mxu0 %v1032
    %1082 = vmatprep.subr.bf16.mxu0 0
    %1083 = vmatpush1.bf16.msra.mxu0 0
    %1084 = vmatprep.subr.bf16.mxu0 0
    %1085 = vmatpush1.bf16.msra.mxu0 0
    %1086 = vmatprep.subr.bf16.mxu0 0
    %1087 = vmatpush1.bf16.msra.mxu0 0
    %1088 = vmatprep.subr.bf16.mxu0 0
    %1089 = vmatpush1.bf16.msra.mxu0 0
    %1090 = vmatprep.subr.bf16.mxu0 0
    %1091 = vmatpush1.bf16.msra.mxu0 0
    %1092 = vmatprep.subr.bf16.mxu0 0
    %1093 = vmatpush1.bf16.msra.mxu0 0
    %1094 = vmatprep.subr.bf16.mxu0 0
    %1095 = vmatpush1.bf16.msra.mxu0 0
    %1096 = vmatprep.subr.bf16.mxu0 0
    %1097 = vmatpush1.bf16.msra.mxu0 0
    %1098 = vmatprep.subr.bf16.mxu0 0
    %1099 = vmatpush1.bf16.msra.mxu0 0
    %1100 = vmatprep.subr.bf16.mxu0 0
    %1101 = vmatpush1.bf16.msra.mxu0 0
    %1102 = vmatprep.subr.bf16.mxu0 0
    %1103 = vmatpush1.bf16.msra.mxu0 0
    %1104 = vmatprep.subr.bf16.mxu0 0
    %1105 = vmatpush1.bf16.msra.mxu0 0
    %1106 = vmatprep.subr.bf16.mxu0 0
    %1107 = vmatpush1.bf16.msra.mxu0 0
    %1108 = vmatprep.subr.bf16.mxu0 0
    %1109 = vmatpush1.bf16.msra.mxu0 0
    %1110 = vmatprep.subr.bf16.mxu0 0
    %1111 = vmatpush1.bf16.msra.mxu0 0
    %1112 = vmatprep.mubr.bf16.mxu0 0
    %1113 = vmatmul.mubr.bf16.gmra.mrb[0].mxu0 %v1023
    %v1114 = vpop.f32.mrb[0].mxu0
    %v1115 = vadd.f32 0.0, %v1114
    %v1116 = vpop.f32.mrb[0].mxu0
    %v1117 = vadd.f32 0.0, %v1116
    %v1118 = vpop.f32.mrb[0].mxu0
    %v1119 = vadd.f32 0.0, %v1118
    %v1120 = vpop.f32.mrb[0].mxu0
    %v1121 = vadd.f32 0.0, %v1120
    %1122 = vdwg.mxu0
    %v1123 = vld [vmem:[%s9] sm:$0xff]
    %v1124 = vld [vmem:[%s9 + $0x8] sm:$0xff]
    %v1125 = vld [vmem:[%s10] sm:$0xff]
    %v1126 = vld [vmem:[%s10 + $0x8] sm:$0xff]
    %v1127 = vadd.f32 %v1072, %v1074
    %v1128 = vadd.f32 %v1127, %v1115
    %v1129 = vadd.f32 %v1128, %v1117
    %1130 = vadd.xlane.f32.xlu0 %v1129
    %v1131 = vpop.xlane.xlu0 %1130
    %v1132 = vadd.f32 %v1076, %v1078
    %v1133 = vadd.f32 %v1132, %v1119
    %v1134 = vadd.f32 %v1133, %v1121
    %1135 = vadd.xlane.f32.xlu0 %v1134
    %v1136 = vpop.xlane.xlu0 %1135
    %v1137 = vmul.f32 %v1131, %v165
    %v1138 = vmul.f32 %v1136, %v165
    %v1139 = vsub.f32 %v1072, %v1137
    %v1140 = vsub.f32 %v1074, %v1137
    %v1141 = vsub.f32 %v1115, %v1137
    %v1142 = vsub.f32 %v1117, %v1137
    %v1143 = vsub.f32 %v1076, %v1138
    %v1144 = vsub.f32 %v1078, %v1138
    %v1145 = vsub.f32 %v1119, %v1138
    %v1146 = vsub.f32 %v1121, %v1138
    %v1147 = vmul.f32 %v1139, %v1139
    %v1148 = vmul.f32 %v1140, %v1140
    %v1149 = vmul.f32 %v1141, %v1141
    %v1150 = vmul.f32 %v1142, %v1142
    %v1151 = vmul.f32 %v1143, %v1143
    %v1152 = vmul.f32 %v1144, %v1144
    %v1153 = vmul.f32 %v1145, %v1145
    %v1154 = vmul.f32 %v1146, %v1146
    %v1155 = vadd.f32 %v1147, %v1148
    %v1156 = vadd.f32 %v1155, %v1149
    %v1157 = vadd.f32 %v1156, %v1150
    %1158 = vadd.xlane.f32.xlu0 %v1157
    %v1159 = vpop.xlane.xlu0 %1158
    %v1160 = vadd.f32 %v1151, %v1152
    %v1161 = vadd.f32 %v1160, %v1153
    %v1162 = vadd.f32 %v1161, %v1154
    %1163 = vadd.xlane.f32.xlu0 %v1162
    %v1164 = vpop.xlane.xlu0 %1163
    %v1165 = vmul.f32 %v1159, %v165
    %v1166 = vmul.f32 %v1164, %v165
    %v1167 = vadd.f32 %v1165, 1e-05
    %v1168 = vadd.f32 %v1166, 1e-05
    %v1169 = vrsqrt.pop %v1167
    %v1170 = vrsqrt.pop %v1168
    %v1171 = vmul.f32 %v1123, %v1169
    %v1172 = vmul.f32 %v1124, %v1170
    %1174 = vset.pattern.permute.xlu0 0
    %1175 = vperm.xlu0 %1174, %v1171
    %v1176 = vpop.permute.xlu0 %1175
    %1179 = vset.pattern.permute.xlu0 0
    %1180 = vperm.xlu0 %1179, %v1172
    %v1181 = vpop.permute.xlu0 %1180
    %v1183 = vmul.f32 %v1072, %v1176
    %v1184 = vmul.f32 %v1074, %v1176
    %v1185 = vmul.f32 %v1115, %v1176
    %v1186 = vmul.f32 %v1117, %v1176
    %v1187 = vmul.f32 %v1076, %v1181
    %v1188 = vmul.f32 %v1078, %v1181
    %v1189 = vmul.f32 %v1119, %v1181
    %v1190 = vmul.f32 %v1121, %v1181
    %v1191 = vmul.f32 %v1137, %v1171
    %v1192 = vmul.f32 %v1138, %v1172
    %v1193 = vsub.f32 %v1125, %v1191
    %v1194 = vsub.f32 %v1126, %v1192
    %1196 = vset.pattern.permute.xlu0 0
    %1197 = vperm.xlu0 %1196, %v1193
    %v1198 = vpop.permute.xlu0 %1197
    %1201 = vset.pattern.permute.xlu0 0
    %1202 = vperm.xlu0 %1201, %v1194
    %v1203 = vpop.permute.xlu0 %1202
    %v1205 = vadd.f32 %v1183, %v1198
    %v1206 = vadd.f32 %v1184, %v1198
    %v1207 = vadd.f32 %v1185, %v1198
    %v1208 = vadd.f32 %v1186, %v1198
    %v1209 = vadd.f32 %v1187, %v1203
    %v1210 = vadd.f32 %v1188, %v1203
    %v1211 = vadd.f32 %v1189, %v1203
    %v1212 = vadd.f32 %v1190, %v1203
    %v1213 = vadd.f32 %v1205, %v54
    %v1214 = vadd.f32 %v1206, %v55
    %v1215 = vadd.f32 %v1207, %v56
    %v1216 = vadd.f32 %v1208, %v57
    %v1217 = vadd.f32 %v1209, %v58
    %v1218 = vadd.f32 %v1210, %v59
    %v1219 = vadd.f32 %v1211, %v60
    %v1220 = vadd.f32 %v1212, %v61
    %v1221 = vmax.f32 %v1213, 0.0
    %v1222 = vmax.f32 %v1214, 0.0
    %v1223 = vmax.f32 %v1215, 0.0
    %v1224 = vmax.f32 %v1216, 0.0
    %v1225 = vmax.f32 %v1217, 0.0
    %v1226 = vmax.f32 %v1218, 0.0
    %v1227 = vmax.f32 %v1219, 0.0
    %v1228 = vmax.f32 %v1220, 0.0
    %1229 = vst [vmem:[#allocation7] sm:$0xff] %v1221
    %1230 = vst [vmem:[#allocation7 + $0x8] sm:$0xff] %v1222
    %1231 = vst [vmem:[#allocation7 + $0x10] sm:$0xff] %v1223
    %1232 = vst [vmem:[#allocation7 + $0x18] sm:$0xff] %v1224
    %1233 = vst [vmem:[#allocation7 + $0x20] sm:$0xff] %v1225
    %1234 = vst [vmem:[#allocation7 + $0x28] sm:$0xff] %v1226
    %1235 = vst [vmem:[#allocation7 + $0x30] sm:$0xff] %v1227
    %1236 = vst [vmem:[#allocation7 + $0x38] sm:$0xff] %v1228
    // Predicated region
    $region50: #{tpu_custom_call.1} parent=1 // pred_check
      _
    $region51: #{tpu_custom_call.1} parent=1 // pred_check_branch
      %1238 = sbr.rel (0) target = $region53
    $region52: #{tpu_custom_call.1} parent=1 // pred_region
      %s1240 = ssub.s32 1024, 1024
      %1241 = vsyncadd [#allocation6], %s1240
      %s1242 = sshll.u32 [#allocation7], 4
      %s1243 = int_to_ptr.vmem [resolvable:$true] %s1242
      %1248 = dma.vmem_to_hbm [thread:$0]  %s1243, 1024, %s11, [#allocation6], 512, 512, 32
    $region53: #{tpu_custom_call.1} parent=1 // pred_fallthru
      _
    // Predicated region
    $region54: #{tpu_custom_call.1} parent=1 // pred_check
      _
    $region55: #{tpu_custom_call.1} parent=1 // pred_check_branch
      %1250 = sbr.rel (0) target = $region57
    $region56: #{tpu_custom_call.1} parent=1 // pred_region
      %1251 = dma.done [#allocation6], 1024
    $region57: #{tpu_custom_call.1} parent=1 // pred_fallthru
      _
    %1252 = vsyncpa [#allocation5], 1
    %1253 = vsyncpa [#allocation6], 1

</llo_original>
